<compile_context>
chip_gen: v7x
topology: tpu7x:2x2x1
jax: 0.10.0
libtpu: 0.0.40
codegen_flags: <defaults>
</compile_context>

<pallas_src>
import functools

import jax
import jax.numpy as jnp
import numpy as np
from jax import lax
from jax.experimental import pallas as pl
from jax.experimental.pallas import tpu as pltpu

# -------------------- config (mirrors Config in the PyTorch module) ----------
EMBED_DIM = 10          # word_embed_size
HIDDEN_DIM = 20         # lstm_hidden_size (per-direction H = 10)
TAGSET_SIZE = 17        # label_size (includes <START>, <STOP>)
START_TAG_IDX = 15
STOP_TAG_IDX = 16
VOCAB_SIZE = 50
SEQ_LEN = 8
BATCH = 4

NEG_INF = -10000.0


# -------------------- packed-parameter-blob row layout ------------------------
def _round8(n):
    return (n + 7) // 8 * 8


def _row_layout():
    H = HIDDEN_DIM // 2
    sizes = [("xw", 2 * VOCAB_SIZE),   # (2V, 8H) fused input projection (+bias)
             ("whh", 2 * H),           # (2H, 8H) block-diagonal recurrent weights
             ("h0", 1),                # (1, 2H)
             ("c0", 1),                # (1, 2H)
             ("wtf", 2 * H),           # (2H, K) hidden2tag, fwd half (bwd rows 0)
             ("wtb", 2 * H),           # (2H, K) hidden2tag, bwd half (fwd rows 0)
             ("bt", 1),                # (1, K)
             ("trt", TAGSET_SIZE),     # (K, K) transitions.T  [prev, next]
             ("tr", TAGSET_SIZE),      # (K, K) transitions    [next, prev]
             ("stc", TAGSET_SIZE),     # (K, 1) transitions[STOP] as column
             ("str", 1)]               # (1, K) transitions[STOP] as row
    offs, r = {}, 0
    for k, n in sizes:
        offs[k] = r
        r += _round8(n)
    return offs, r


OFFS, TOTAL_ROWS = _row_layout()


# ----------------------- fused BiLSTM + CRF Viterbi kernel -------------------
def _bilstm_crf_kernel(H, K, T, V, start_idx, offs,
                       ids_ref, blob_ref, out_ref, hf_ref, hb_ref):
    f32 = jnp.float32
    H2 = 2 * H          # fused (bi-directional) hidden width
    G = 8 * H           # fused gate width: [i_f i_b | f_f f_b | o_f o_b | g_f g_b]

    # ------------- static views into the packed parameter blob ---------------
    xw_tbl = blob_ref[offs["xw"]:offs["xw"] + 2 * V, 0:G]      # (2V, 8H), bias folded
    whh_bd = blob_ref[offs["whh"]:offs["whh"] + H2, 0:G]       # (2H, 8H) block-diag
    h0 = blob_ref[offs["h0"]:offs["h0"] + 1, 0:H2]             # (1, 2H)
    c0 = blob_ref[offs["c0"]:offs["c0"] + 1, 0:H2]
    wtag_f = blob_ref[offs["wtf"]:offs["wtf"] + H2, 0:K]       # (2H, K)
    wtag_b = blob_ref[offs["wtb"]:offs["wtb"] + H2, 0:K]
    btag = blob_ref[offs["bt"]:offs["bt"] + 1, 0:K]            # (1, K)
    trans_t = blob_ref[offs["trt"]:offs["trt"] + K, 0:K]       # [prev, next]
    trans = blob_ref[offs["tr"]:offs["tr"] + K, 0:K]           # [next, prev]
    stop_c = blob_ref[offs["stc"]:offs["stc"] + K, 0:1]        # (K, 1)
    stop_r = blob_ref[offs["str"]:offs["str"] + 1, 0:K]        # (1, K)

    # ------- embedding + input projection (both directions) in ONE matmul ----
    ids2 = ids_ref[0]                                           # (T, 2): ids, reversed ids
    col = lax.broadcasted_iota(jnp.int32, (T, 2 * V), 1)
    tgt = jnp.where(col < V, ids2[:, 0:1], ids2[:, 1:2] + V)
    onehot2 = (col == tgt).astype(f32)                          # (T, 2V)
    xw = jnp.dot(onehot2, xw_tbl, preferred_element_type=f32)   # (T, 8H): fwd@t | bwd@T-1-t

    # ------- fused bidirectional recurrence (1 matmul / 1 sigmoid per step) --
    def sig(x):                                                 # single EUP push
        return 0.5 * jnp.tanh(0.5 * x) + 0.5

    h, c = h0, c0                                               # (1, 2H) = [fwd | bwd]
    for s in range(T):
        gates = xw[s:s + 1, :] + jnp.dot(h, whh_bd, preferred_element_type=f32)
        sg = sig(gates[:, :6 * H])                              # i_f i_b f_f f_b o_f o_b
        gg = jnp.tanh(gates[:, 6 * H:])                         # g_f g_b
        c = sg[:, H2:2 * H2] * c + sg[:, :H2] * gg
        h = sg[:, 2 * H2:3 * H2] * jnp.tanh(c)
        hf_ref[s:s + 1, :] = h                                  # fwd half valid for time s
        hb_ref[T - 1 - s:T - s, :] = h                          # bwd half valid for T-1-s

    # ------- hidden2tag with zero-padded halves (no lane-unaligned concat) ---
    feats = (jnp.dot(hf_ref[...], wtag_f, preferred_element_type=f32)
             + jnp.dot(hb_ref[...], wtag_b, preferred_element_type=f32)
             + btag)                                            # (T, K)

    # ------- Viterbi DP with alternating fv orientation ----------------------
    iota_r = lax.broadcasted_iota(jnp.int32, (K, K), 0)         # prev index, even steps
    iota_c = lax.broadcasted_iota(jnp.int32, (K, K), 1)         # prev index, odd steps
    iota_lane = lax.broadcasted_iota(jnp.int32, (1, K), 1)
    iota_sub = lax.broadcasted_iota(jnp.int32, (K, 1), 0)
    eyeK = (iota_r == iota_c).astype(f32)

    # feats columns needed by odd steps, hoisted OFF the serial DP chain
    feat_col = {t: jnp.sum(eyeK * feats[t:t + 1, :], axis=1, keepdims=True)
                for t in range(1, T, 2)}                        # (K, 1) each

    fv = jnp.where(iota_sub == start_idx, 0.0, NEG_INF).astype(f32)   # (K,1) over prev
    bps = []
    for t in range(T):
        if t % 2 == 0:                          # fv is a column over prev
            M = trans_t + fv                                    # M[prev, next]
            mx = jnp.max(M, axis=0, keepdims=True)              # (1, K)
            bp = jnp.min(jnp.where(M == mx, iota_r, K), axis=0,
                         keepdims=True).astype(jnp.int32)       # (1, K) over next
            fv = mx + feats[t:t + 1, :]                         # row
        else:                                   # fv is a row over prev
            M = trans + fv                                      # M[next, prev]
            mx = jnp.max(M, axis=1, keepdims=True)              # (K, 1)
            bp = jnp.min(jnp.where(M == mx, iota_c, K), axis=1,
                         keepdims=True).astype(jnp.int32)       # (K, 1) over next
            fv = mx + feat_col[t]                               # column
        bps.append(bp)

    if (T - 1) % 2 == 0:                        # final fv is a row
        term = fv + stop_r
        best_score = jnp.max(term, axis=1, keepdims=True)
        best_tag = jnp.min(jnp.where(term == best_score, iota_lane, K),
                           axis=1, keepdims=True).astype(jnp.int32)
    else:                                       # final fv is a column
        term = fv + stop_c
        best_score = jnp.max(term, axis=0, keepdims=True)
        best_tag = jnp.min(jnp.where(term == best_score, iota_sub, K),
                           axis=0, keepdims=True).astype(jnp.int32)

    # ------- back-trace, packed into ONE lane-dense (1,128) int32 row --------
    #   lane 0       : best path score (f32 bit pattern)
    #   lanes 1..T   : decoded tag sequence
    #   lane  T+1    : predecessor of the first tag (must be <START>)
    lane = lax.broadcasted_iota(jnp.int32, (1, 128), 1)
    packed = pltpu.bitcast(jnp.where(lane == 0, best_score, 0.0), jnp.int32)
    cur = best_tag                                              # (1, 1)
    packed = jnp.where(lane == T, cur, packed)                  # path[T-1] at lane T
    for t in range(T - 1, 0, -1):
        if t % 2 == 0:                          # bps[t] is a (1, K) row
            cur = jnp.sum(jnp.where(iota_lane == cur, bps[t], 0),
                          axis=1, keepdims=True)
        else:                                   # bps[t] is a (K, 1) column
            cur = jnp.sum(jnp.where(iota_sub == cur, bps[t], 0),
                          axis=0, keepdims=True)
        packed = jnp.where(lane == t, cur, packed)              # path[t-1] at lane t
    start_chk = jnp.sum(jnp.where(iota_lane == cur, bps[0], 0),
                        axis=1, keepdims=True)
    packed = jnp.where(lane == T + 1, start_chk, packed)
    out_ref[0] = packed


def _forward(sentences, blob):
    B, T = sentences.shape
    H = HIDDEN_DIM // 2
    ids2 = jnp.stack([sentences, sentences[:, ::-1]], axis=-1).astype(jnp.int32)

    kernel = functools.partial(_bilstm_crf_kernel, H, TAGSET_SIZE, T,
                               VOCAB_SIZE, START_TAG_IDX, OFFS)
    out = pl.pallas_call(
        kernel,
        out_shape=jax.ShapeDtypeStruct((B, 1, 128), jnp.int32),
        grid=(B,),
        in_specs=[pl.BlockSpec((1, T, 2), lambda b: (b, 0, 0)),
                  pl.BlockSpec((TOTAL_ROWS, 128), lambda b: (0, 0))],
        out_specs=pl.BlockSpec((1, 1, 128), lambda b: (b, 0, 0)),
        scratch_shapes=[pltpu.VMEM((T, HIDDEN_DIM), jnp.float32),
                        pltpu.VMEM((T, HIDDEN_DIM), jnp.float32)],
        compiler_params=pltpu.CompilerParams(
            dimension_semantics=("parallel",)),
    )(ids2, blob)

    scores = lax.bitcast_convert_type(out[:, 0, 0], jnp.float32)
    paths = out[:, 0, 1:T + 1]
    starts = out[:, 0, T + 1]
    return scores, paths, starts


bilstm_crf_forward = jax.jit(_forward)


# ----------------------------- Parameter setup --------------------------------
def init_params(key):
    E, H2, K = EMBED_DIM, HIDDEN_DIM, TAGSET_SIZE
    H = H2 // 2
    ks = jax.random.split(key, 12)
    std = 1.0 / np.sqrt(H)

    def unif(k, shape):
        return jax.random.uniform(k, shape, jnp.float32, -std, std)

    transitions = jax.random.normal(ks[0], (K, K), jnp.float32)
    transitions = transitions.at[START_TAG_IDX, :].set(NEG_INF)
    transitions = transitions.at[:, STOP_TAG_IDX].set(NEG_INF)

    return {
        "embedding": jax.random.normal(ks[1], (VOCAB_SIZE, E), jnp.float32),
        # PyTorch nn.LSTM layout: (4H, *), gate order (i, f, g, o); combined bias.
        "wih_f": unif(ks[2], (4 * H, E)),
        "whh_f": unif(ks[3], (4 * H, H)),
        "b_f": unif(ks[4], (1, 4 * H)),
        "wih_b": unif(ks[5], (4 * H, E)),
        "whh_b": unif(ks[6], (4 * H, H)),
        "b_b": unif(ks[7], (1, 4 * H)),
        "h0": jax.random.normal(ks[8], (2, H), jnp.float32),   # init_hidden()
        "c0": jax.random.normal(ks[9], (2, H), jnp.float32),
        "wtag": unif(ks[10], (K, H2)),                         # hidden2tag
        "btag": unif(ks[11], (1, K)),
        "transitions": transitions,
    }


def pack_params(params):
    """One-time host-side repack of all parameters into a single (ROWS,128) blob."""
    H = HIDDEN_DIM // 2
    V = VOCAB_SIZE
    K = TAGSET_SIZE
    emb = params["embedding"].astype(jnp.float32)

    def split_ifgo(w):                 # PyTorch gate order along dim 0
        n = w.shape[0] // 4
        return w[:n], w[n:2 * n], w[2 * n:3 * n], w[3 * n:]

    Wii_f, Wif_f, Wig_f, Wio_f = split_ifgo(params["wih_f"])
    Wii_b, Wif_b, Wig_b, Wio_b = split_ifgo(params["wih_b"])
    bi_f, bf_f, bg_f, bo_f = split_ifgo(params["b_f"].reshape(-1))
    bi_b, bf_b, bg_b, bo_b = split_ifgo(params["b_b"].reshape(-1))
    Uii_f, Uif_f, Uig_f, Uio_f = split_ifgo(params["whh_f"])
    Uii_b, Uif_b, Uig_b, Uio_b = split_ifgo(params["whh_b"])

    ZVH = jnp.zeros((V, H), jnp.float32)
    ZHH = jnp.zeros((H, H), jnp.float32)
    ZHK = jnp.zeros((H, K), jnp.float32)

    # gate-column layout: [i_f i_b | f_f f_b | o_f o_b | g_f g_b]
    xw_top = jnp.concatenate([emb @ Wii_f.T + bi_f, ZVH,
                              emb @ Wif_f.T + bf_f, ZVH,
                              emb @ Wio_f.T + bo_f, ZVH,
                              emb @ Wig_f.T + bg_f, ZVH], axis=1)
    xw_bot = jnp.concatenate([ZVH, emb @ Wii_b.T + bi_b,
                              ZVH, emb @ Wif_b.T + bf_b,
                              ZVH, emb @ Wio_b.T + bo_b,
                              ZVH, emb @ Wig_b.T + bg_b], axis=1)
    xw_tbl = jnp.concatenate([xw_top, xw_bot], axis=0)              # (2V, 8H)

    whh_bd = jnp.concatenate([
        jnp.concatenate([Uii_f.T, ZHH, Uif_f.T, ZHH,
                         Uio_f.T, ZHH, Uig_f.T, ZHH], axis=1),      # acts on h_f
        jnp.concatenate([ZHH, Uii_b.T, ZHH, Uif_b.T,
                         ZHH, Uio_b.T, ZHH, Uig_b.T], axis=1),      # acts on h_b
    ], axis=0)                                                      # (2H, 8H)

    h0 = params["h0"].reshape(1, 2 * H)
    c0 = params["c0"].reshape(1, 2 * H)

    wtag_t = params["wtag"].T                                       # (2H, K)
    wtag_f = jnp.concatenate([wtag_t[:H], ZHK], axis=0)
    wtag_b = jnp.concatenate([ZHK, wtag_t[H:]], axis=0)
    btag = params["btag"].reshape(1, K)

    trans = params["transitions"]                                   # [next, prev]
    trans_t = trans.T                                               # [prev, next]
    stop_row = trans[STOP_TAG_IDX][None, :]
    stop_col = trans[STOP_TAG_IDX][:, None]

    blob = jnp.zeros((TOTAL_ROWS, 128), jnp.float32)

    def put(b, key, arr):
        r = OFFS[key]
        return b.at[r:r + arr.shape[0], :arr.shape[1]].set(arr.astype(jnp.float32))

    blob = put(blob, "xw", xw_tbl)
    blob = put(blob, "whh", whh_bd)
    blob = put(blob, "h0", h0)
    blob = put(blob, "c0", c0)
    blob = put(blob, "wtf", wtag_f)
    blob = put(blob, "wtb", wtag_b)
    blob = put(blob, "bt", btag)
    blob = put(blob, "trt", trans_t)
    blob = put(blob, "tr", trans)
    blob = put(blob, "stc", stop_col)
    blob = put(blob, "str", stop_row)
    return blob


# ----------------------- pure-NumPy reference (the PyTorch spec) --------------
def reference_forward(sentence, params):
    p = {k: np.asarray(v, dtype=np.float32) for k, v in params.items()}
    T = len(sentence)
    H = p["whh_f"].shape[1]
    embeds = p["embedding"][np.asarray(sentence)]

    def sigmoid(x):
        return 1.0 / (1.0 + np.exp(-x))

    def run_dir(wih, whh, b, h, c, order):
        hs = np.zeros((T, H), np.float32)
        for t in order:
            gates = embeds[t] @ wih.T + h @ whh.T + b[0]
            i = sigmoid(gates[0:H])
            f = sigmoid(gates[H:2 * H])
            g = np.tanh(gates[2 * H:3 * H])
            o = sigmoid(gates[3 * H:4 * H])
            c = f * c + i * g
            h = o * np.tanh(c)
            hs[t] = h
        return hs

    hf = run_dir(p["wih_f"], p["whh_f"], p["b_f"], p["h0"][0], p["c0"][0], range(T))
    hb = run_dir(p["wih_b"], p["whh_b"], p["b_b"], p["h0"][1], p["c0"][1],
                 range(T - 1, -1, -1))
    feats = np.concatenate([hf, hb], axis=1) @ p["wtag"].T + p["btag"][0]

    trans = p["transitions"]
    K = trans.shape[0]
    fv = np.full((K,), NEG_INF, np.float32)
    fv[START_TAG_IDX] = 0.0
    bps = []
    for t in range(T):
        M = fv[None, :] + trans                 # M[next, prev]
        bps.append(M.argmax(axis=1))
        fv = M.max(axis=1) + feats[t]
    term = fv + trans[STOP_TAG_IDX]
    best = int(term.argmax())
    score = float(term[best])
    path = [best]
    for bp in reversed(bps):
        best = int(bp[best])
        path.append(best)
    start = path.pop()
    path.reverse()
    assert start == START_TAG_IDX
    return score, path, feats, trans


def score_of_path(path, feats, trans):
    s, prev = 0.0, START_TAG_IDX
    for t, tag in enumerate(path):
        s += float(trans[tag, prev]) + float(feats[t, tag])
        prev = tag
    return s + float(trans[STOP_TAG_IDX, prev])


# ----------------------------------- main -------------------------------------
if __name__ == "__main__":
    key = jax.random.PRNGKey(0)
    k_param, k_sent = jax.random.split(key)
    params = init_params(k_param)
    sentences = jax.random.randint(k_sent, (BATCH, SEQ_LEN), 0, VOCAB_SIZE, jnp.int32)

    blob = pack_params(params)                   # one-time host-side weight repack
    scores_d, paths_d, starts_d = bilstm_crf_forward(sentences, blob)
    jax.block_until_ready((scores_d, paths_d, starts_d))

    scores = np.asarray(scores_d)
    paths = np.asarray(paths_d)
    starts = np.asarray(starts_d)

    for b in range(BATCH):
        ref_score, ref_path, ref_feats, ref_trans = reference_forward(
            np.asarray(sentences[b]), params)
        path = [int(x) for x in paths[b]]
        assert int(starts[b]) == START_TAG_IDX, (b, int(starts[b]))
        assert len(path) == SEQ_LEN
        assert np.isfinite(scores[b])
        assert abs(float(scores[b]) - ref_score) < 0.3, (b, float(scores[b]), ref_score)
        # decoded path must be (numerically) optimal under the reference scores
        assert score_of_path(path, ref_feats, ref_trans) >= ref_score - 0.3

    print("KERNEL_OK")
</pallas_src>

<mosaic_0001>
module attributes {stable_mosaic.version = 11 : i64} {
  func.func @_bilstm_crf_kernel(%arg0: i32, %arg1: memref<1x8x2xi32, #tpu.memory_space<vmem>>, %arg2: memref<280x128xf32, #tpu.memory_space<vmem>>, %arg3: memref<1x1x128xi32, #tpu.memory_space<vmem>>, %arg4: memref<8x20xf32, #tpu.memory_space<vmem>>, %arg5: memref<8x20xf32, #tpu.memory_space<vmem>>) attributes {dimension_semantics = [#tpu.dimension_semantics<parallel>], iteration_bounds = array<i64: 4>, scalar_prefetch = 0 : i64, scratch_operands = 2 : i64, tpu.core_type = #tpu.core_type<tc>, window_params = [{transform_indices = @transform_0, window_bounds = array<i64: 1, 8, 2>}, {pipeline_mode = #tpu.pipeline_mode<synchronous>, transform_indices = @transform_1, window_bounds = array<i64: 280, 128>}, {transform_indices = @transform_2, window_bounds = array<i64: 1, 1, 128>}]} {
    %c0 = arith.constant 0 : index
    %c0_0 = arith.constant 0 : index
    %0 = vector.load %arg2[%c0, %c0_0] : memref<280x128xf32, #tpu.memory_space<vmem>>, vector<100x80xf32>
    %c104 = arith.constant 104 : index
    %c0_1 = arith.constant 0 : index
    %1 = vector.load %arg2[%c104, %c0_1] : memref<280x128xf32, #tpu.memory_space<vmem>>, vector<20x80xf32>
    %c128 = arith.constant 128 : index
    %c0_2 = arith.constant 0 : index
    %2 = vector.load %arg2[%c128, %c0_2] : memref<280x128xf32, #tpu.memory_space<vmem>>, vector<1x20xf32>
    %c136 = arith.constant 136 : index
    %c0_3 = arith.constant 0 : index
    %3 = vector.load %arg2[%c136, %c0_3] : memref<280x128xf32, #tpu.memory_space<vmem>>, vector<1x20xf32>
    %c144 = arith.constant 144 : index
    %c0_4 = arith.constant 0 : index
    %4 = vector.load %arg2[%c144, %c0_4] : memref<280x128xf32, #tpu.memory_space<vmem>>, vector<20x17xf32>
    %c168 = arith.constant 168 : index
    %c0_5 = arith.constant 0 : index
    %5 = vector.load %arg2[%c168, %c0_5] : memref<280x128xf32, #tpu.memory_space<vmem>>, vector<20x17xf32>
    %c192 = arith.constant 192 : index
    %c0_6 = arith.constant 0 : index
    %6 = vector.load %arg2[%c192, %c0_6] : memref<280x128xf32, #tpu.memory_space<vmem>>, vector<1x17xf32>
    %c200 = arith.constant 200 : index
    %c0_7 = arith.constant 0 : index
    %7 = vector.load %arg2[%c200, %c0_7] : memref<280x128xf32, #tpu.memory_space<vmem>>, vector<17x17xf32>
    %c224 = arith.constant 224 : index
    %c0_8 = arith.constant 0 : index
    %8 = vector.load %arg2[%c224, %c0_8] : memref<280x128xf32, #tpu.memory_space<vmem>>, vector<17x17xf32>
    %c248 = arith.constant 248 : index
    %c0_9 = arith.constant 0 : index
    %9 = vector.load %arg2[%c248, %c0_9] : memref<280x128xf32, #tpu.memory_space<vmem>>, vector<17x1xf32>
    %c0_10 = arith.constant 0 : index
    %c0_11 = arith.constant 0 : index
    %c0_12 = arith.constant 0 : index
    %10 = vector.load %arg1[%c0_10, %c0_11, %c0_12] : memref<1x8x2xi32, #tpu.memory_space<vmem>>, vector<1x8x2xi32>
    %11 = vector.shape_cast %10 : vector<1x8x2xi32> to vector<8x2xi32>
    %12 = tpu.iota {dimensions = array<i32: 1>} : vector<8x100xi32>
    %c50_i32 = arith.constant 50 : i32
    %13 = vector.broadcast %c50_i32 : i32 to vector<8x100xi32>
    %14 = arith.cmpi slt, %12, %13 : vector<8x100xi32>
    %15 = vector.extract_strided_slice %11 {offsets = [0, 0], sizes = [8, 1], strides = [1, 1]} : vector<8x2xi32> to vector<8x1xi32>
    %16 = vector.extract_strided_slice %11 {offsets = [0, 1], sizes = [8, 1], strides = [1, 1]} : vector<8x2xi32> to vector<8x1xi32>
    %c50_i32_13 = arith.constant 50 : i32
    %17 = vector.broadcast %c50_i32_13 : i32 to vector<8x1xi32>
    %18 = arith.addi %16, %17 : vector<8x1xi32>
    %19 = vector.shape_cast %15 : vector<8x1xi32> to vector<8x1xi32>
    %20 = vector.broadcast %19 : vector<8x1xi32> to vector<8x100xi32>
    %21 = vector.shape_cast %18 : vector<8x1xi32> to vector<8x1xi32>
    %22 = vector.broadcast %21 : vector<8x1xi32> to vector<8x100xi32>
    %23 = arith.select %14, %20, %22 : vector<8x100xi1>, vector<8x100xi32>
    %24 = arith.cmpi eq, %12, %23 : vector<8x100xi32>
    %25 = arith.extui %24 : vector<8x100xi1> to vector<8x100xi32>
    %26 = arith.sitofp %25 : vector<8x100xi32> to vector<8x100xf32>
    %cst = arith.constant dense<0.000000e+00> : vector<8x80xf32>
    %27 = tpu.matmul %26, %0, %cst {dimension_numbers = #tpu.dot_dimension_numbers<[1], [0], [0], [1], [0, 0, 1, 1], [], []>} : vector<8x100xf32>, vector<100x80xf32>, vector<8x80xf32> -> vector<8x80xf32>
    %28 = vector.extract_strided_slice %27 {offsets = [0, 0], sizes = [1, 80], strides = [1, 1]} : vector<8x80xf32> to vector<1x80xf32>
    %cst_14 = arith.constant dense<0.000000e+00> : vector<1x80xf32>
    %29 = tpu.matmul %2, %1, %cst_14 {dimension_numbers = #tpu.dot_dimension_numbers<[1], [0], [0], [1], [0, 0, 1, 1], [], []>} : vector<1x20xf32>, vector<20x80xf32>, vector<1x80xf32> -> vector<1x80xf32>
    %30 = arith.addf %28, %29 : vector<1x80xf32>
    %31 = vector.extract_strided_slice %30 {offsets = [0, 0], sizes = [1, 60], strides = [1, 1]} : vector<1x80xf32> to vector<1x60xf32>
    %cst_15 = arith.constant 5.000000e-01 : f32
    %32 = vector.broadcast %cst_15 : f32 to vector<1x60xf32>
    %33 = arith.mulf %32, %31 : vector<1x60xf32>
    %34 = math.tanh %33 : vector<1x60xf32>
    %cst_16 = arith.constant 5.000000e-01 : f32
    %35 = vector.broadcast %cst_16 : f32 to vector<1x60xf32>
    %36 = arith.mulf %35, %34 : vector<1x60xf32>
    %cst_17 = arith.constant 5.000000e-01 : f32
    %37 = vector.broadcast %cst_17 : f32 to vector<1x60xf32>
    %38 = arith.addf %36, %37 : vector<1x60xf32>
    %39 = vector.extract_strided_slice %30 {offsets = [0, 60], sizes = [1, 20], strides = [1, 1]} : vector<1x80xf32> to vector<1x20xf32>
    %40 = math.tanh %39 : vector<1x20xf32>
    %41 = vector.extract_strided_slice %38 {offsets = [0, 20], sizes = [1, 20], strides = [1, 1]} : vector<1x60xf32> to vector<1x20xf32>
    %42 = arith.mulf %41, %3 : vector<1x20xf32>
    %43 = vector.extract_strided_slice %38 {offsets = [0, 0], sizes = [1, 20], strides = [1, 1]} : vector<1x60xf32> to vector<1x20xf32>
    %44 = arith.mulf %43, %40 : vector<1x20xf32>
    %45 = arith.addf %42, %44 : vector<1x20xf32>
    %46 = vector.extract_strided_slice %38 {offsets = [0, 40], sizes = [1, 20], strides = [1, 1]} : vector<1x60xf32> to vector<1x20xf32>
    %47 = math.tanh %45 : vector<1x20xf32>
    %48 = arith.mulf %46, %47 : vector<1x20xf32>
    %c0_18 = arith.constant 0 : index
    %c0_19 = arith.constant 0 : index
    %49 = vector.load %arg4[%c0_18, %c0_19] : memref<8x20xf32, #tpu.memory_space<vmem>>, vector<1x20xf32>
    tpu.vector_store %arg4[%c0_18, %c0_19], %48 {strides = array<i32>} : memref<8x20xf32, #tpu.memory_space<vmem>>, vector<1x20xf32>,
    %c7 = arith.constant 7 : index
    %c0_20 = arith.constant 0 : index
    %50 = vector.load %arg5[%c7, %c0_20] : memref<8x20xf32, #tpu.memory_space<vmem>>, vector<1x20xf32>
    tpu.vector_store %arg5[%c7, %c0_20], %48 {strides = array<i32>} : memref<8x20xf32, #tpu.memory_space<vmem>>, vector<1x20xf32>,
    %51 = vector.extract_strided_slice %27 {offsets = [1, 0], sizes = [1, 80], strides = [1, 1]} : vector<8x80xf32> to vector<1x80xf32>
    %cst_21 = arith.constant dense<0.000000e+00> : vector<1x80xf32>
    %52 = tpu.matmul %48, %1, %cst_21 {dimension_numbers = #tpu.dot_dimension_numbers<[1], [0], [0], [1], [0, 0, 1, 1], [], []>} : vector<1x20xf32>, vector<20x80xf32>, vector<1x80xf32> -> vector<1x80xf32>
    %53 = arith.addf %51, %52 : vector<1x80xf32>
    %54 = vector.extract_strided_slice %53 {offsets = [0, 0], sizes = [1, 60], strides = [1, 1]} : vector<1x80xf32> to vector<1x60xf32>
    %cst_22 = arith.constant 5.000000e-01 : f32
    %55 = vector.broadcast %cst_22 : f32 to vector<1x60xf32>
    %56 = arith.mulf %55, %54 : vector<1x60xf32>
    %57 = math.tanh %56 : vector<1x60xf32>
    %cst_23 = arith.constant 5.000000e-01 : f32
    %58 = vector.broadcast %cst_23 : f32 to vector<1x60xf32>
    %59 = arith.mulf %58, %57 : vector<1x60xf32>
    %cst_24 = arith.constant 5.000000e-01 : f32
    %60 = vector.broadcast %cst_24 : f32 to vector<1x60xf32>
    %61 = arith.addf %59, %60 : vector<1x60xf32>
    %62 = vector.extract_strided_slice %53 {offsets = [0, 60], sizes = [1, 20], strides = [1, 1]} : vector<1x80xf32> to vector<1x20xf32>
    %63 = math.tanh %62 : vector<1x20xf32>
    %64 = vector.extract_strided_slice %61 {offsets = [0, 20], sizes = [1, 20], strides = [1, 1]} : vector<1x60xf32> to vector<1x20xf32>
    %65 = arith.mulf %64, %45 : vector<1x20xf32>
    %66 = vector.extract_strided_slice %61 {offsets = [0, 0], sizes = [1, 20], strides = [1, 1]} : vector<1x60xf32> to vector<1x20xf32>
    %67 = arith.mulf %66, %63 : vector<1x20xf32>
    %68 = arith.addf %65, %67 : vector<1x20xf32>
    %69 = vector.extract_strided_slice %61 {offsets = [0, 40], sizes = [1, 20], strides = [1, 1]} : vector<1x60xf32> to vector<1x20xf32>
    %70 = math.tanh %68 : vector<1x20xf32>
    %71 = arith.mulf %69, %70 : vector<1x20xf32>
    %c1 = arith.constant 1 : index
    %c0_25 = arith.constant 0 : index
    %72 = vector.load %arg4[%c1, %c0_25] : memref<8x20xf32, #tpu.memory_space<vmem>>, vector<1x20xf32>
    tpu.vector_store %arg4[%c1, %c0_25], %71 {strides = array<i32>} : memref<8x20xf32, #tpu.memory_space<vmem>>, vector<1x20xf32>,
    %c6 = arith.constant 6 : index
    %c0_26 = arith.constant 0 : index
    %73 = vector.load %arg5[%c6, %c0_26] : memref<8x20xf32, #tpu.memory_space<vmem>>, vector<1x20xf32>
    tpu.vector_store %arg5[%c6, %c0_26], %71 {strides = array<i32>} : memref<8x20xf32, #tpu.memory_space<vmem>>, vector<1x20xf32>,
    %74 = vector.extract_strided_slice %27 {offsets = [2, 0], sizes = [1, 80], strides = [1, 1]} : vector<8x80xf32> to vector<1x80xf32>
    %cst_27 = arith.constant dense<0.000000e+00> : vector<1x80xf32>
    %75 = tpu.matmul %71, %1, %cst_27 {dimension_numbers = #tpu.dot_dimension_numbers<[1], [0], [0], [1], [0, 0, 1, 1], [], []>} : vector<1x20xf32>, vector<20x80xf32>, vector<1x80xf32> -> vector<1x80xf32>
    %76 = arith.addf %74, %75 : vector<1x80xf32>
    %77 = vector.extract_strided_slice %76 {offsets = [0, 0], sizes = [1, 60], strides = [1, 1]} : vector<1x80xf32> to vector<1x60xf32>
    %cst_28 = arith.constant 5.000000e-01 : f32
    %78 = vector.broadcast %cst_28 : f32 to vector<1x60xf32>
    %79 = arith.mulf %78, %77 : vector<1x60xf32>
    %80 = math.tanh %79 : vector<1x60xf32>
    %cst_29 = arith.constant 5.000000e-01 : f32
    %81 = vector.broadcast %cst_29 : f32 to vector<1x60xf32>
    %82 = arith.mulf %81, %80 : vector<1x60xf32>
    %cst_30 = arith.constant 5.000000e-01 : f32
    %83 = vector.broadcast %cst_30 : f32 to vector<1x60xf32>
    %84 = arith.addf %82, %83 : vector<1x60xf32>
    %85 = vector.extract_strided_slice %76 {offsets = [0, 60], sizes = [1, 20], strides = [1, 1]} : vector<1x80xf32> to vector<1x20xf32>
    %86 = math.tanh %85 : vector<1x20xf32>
    %87 = vector.extract_strided_slice %84 {offsets = [0, 20], sizes = [1, 20], strides = [1, 1]} : vector<1x60xf32> to vector<1x20xf32>
    %88 = arith.mulf %87, %68 : vector<1x20xf32>
    %89 = vector.extract_strided_slice %84 {offsets = [0, 0], sizes = [1, 20], strides = [1, 1]} : vector<1x60xf32> to vector<1x20xf32>
    %90 = arith.mulf %89, %86 : vector<1x20xf32>
    %91 = arith.addf %88, %90 : vector<1x20xf32>
    %92 = vector.extract_strided_slice %84 {offsets = [0, 40], sizes = [1, 20], strides = [1, 1]} : vector<1x60xf32> to vector<1x20xf32>
    %93 = math.tanh %91 : vector<1x20xf32>
    %94 = arith.mulf %92, %93 : vector<1x20xf32>
    %c2 = arith.constant 2 : index
    %c0_31 = arith.constant 0 : index
    %95 = vector.load %arg4[%c2, %c0_31] : memref<8x20xf32, #tpu.memory_space<vmem>>, vector<1x20xf32>
    tpu.vector_store %arg4[%c2, %c0_31], %94 {strides = array<i32>} : memref<8x20xf32, #tpu.memory_space<vmem>>, vector<1x20xf32>,
    %c5 = arith.constant 5 : index
    %c0_32 = arith.constant 0 : index
    %96 = vector.load %arg5[%c5, %c0_32] : memref<8x20xf32, #tpu.memory_space<vmem>>, vector<1x20xf32>
    tpu.vector_store %arg5[%c5, %c0_32], %94 {strides = array<i32>} : memref<8x20xf32, #tpu.memory_space<vmem>>, vector<1x20xf32>,
    %97 = vector.extract_strided_slice %27 {offsets = [3, 0], sizes = [1, 80], strides = [1, 1]} : vector<8x80xf32> to vector<1x80xf32>
    %cst_33 = arith.constant dense<0.000000e+00> : vector<1x80xf32>
    %98 = tpu.matmul %94, %1, %cst_33 {dimension_numbers = #tpu.dot_dimension_numbers<[1], [0], [0], [1], [0, 0, 1, 1], [], []>} : vector<1x20xf32>, vector<20x80xf32>, vector<1x80xf32> -> vector<1x80xf32>
    %99 = arith.addf %97, %98 : vector<1x80xf32>
    %100 = vector.extract_strided_slice %99 {offsets = [0, 0], sizes = [1, 60], strides = [1, 1]} : vector<1x80xf32> to vector<1x60xf32>
    %cst_34 = arith.constant 5.000000e-01 : f32
    %101 = vector.broadcast %cst_34 : f32 to vector<1x60xf32>
    %102 = arith.mulf %101, %100 : vector<1x60xf32>
    %103 = math.tanh %102 : vector<1x60xf32>
    %cst_35 = arith.constant 5.000000e-01 : f32
    %104 = vector.broadcast %cst_35 : f32 to vector<1x60xf32>
    %105 = arith.mulf %104, %103 : vector<1x60xf32>
    %cst_36 = arith.constant 5.000000e-01 : f32
    %106 = vector.broadcast %cst_36 : f32 to vector<1x60xf32>
    %107 = arith.addf %105, %106 : vector<1x60xf32>
    %108 = vector.extract_strided_slice %99 {offsets = [0, 60], sizes = [1, 20], strides = [1, 1]} : vector<1x80xf32> to vector<1x20xf32>
    %109 = math.tanh %108 : vector<1x20xf32>
    %110 = vector.extract_strided_slice %107 {offsets = [0, 20], sizes = [1, 20], strides = [1, 1]} : vector<1x60xf32> to vector<1x20xf32>
    %111 = arith.mulf %110, %91 : vector<1x20xf32>
    %112 = vector.extract_strided_slice %107 {offsets = [0, 0], sizes = [1, 20], strides = [1, 1]} : vector<1x60xf32> to vector<1x20xf32>
    %113 = arith.mulf %112, %109 : vector<1x20xf32>
    %114 = arith.addf %111, %113 : vector<1x20xf32>
    %115 = vector.extract_strided_slice %107 {offsets = [0, 40], sizes = [1, 20], strides = [1, 1]} : vector<1x60xf32> to vector<1x20xf32>
    %116 = math.tanh %114 : vector<1x20xf32>
    %117 = arith.mulf %115, %116 : vector<1x20xf32>
    %c3 = arith.constant 3 : index
    %c0_37 = arith.constant 0 : index
    %118 = vector.load %arg4[%c3, %c0_37] : memref<8x20xf32, #tpu.memory_space<vmem>>, vector<1x20xf32>
    tpu.vector_store %arg4[%c3, %c0_37], %117 {strides = array<i32>} : memref<8x20xf32, #tpu.memory_space<vmem>>, vector<1x20xf32>,
    %c4 = arith.constant 4 : index
    %c0_38 = arith.constant 0 : index
    %119 = vector.load %arg5[%c4, %c0_38] : memref<8x20xf32, #tpu.memory_space<vmem>>, vector<1x20xf32>
    tpu.vector_store %arg5[%c4, %c0_38], %117 {strides = array<i32>} : memref<8x20xf32, #tpu.memory_space<vmem>>, vector<1x20xf32>,
    %120 = vector.extract_strided_slice %27 {offsets = [4, 0], sizes = [1, 80], strides = [1, 1]} : vector<8x80xf32> to vector<1x80xf32>
    %cst_39 = arith.constant dense<0.000000e+00> : vector<1x80xf32>
    %121 = tpu.matmul %117, %1, %cst_39 {dimension_numbers = #tpu.dot_dimension_numbers<[1], [0], [0], [1], [0, 0, 1, 1], [], []>} : vector<1x20xf32>, vector<20x80xf32>, vector<1x80xf32> -> vector<1x80xf32>
    %122 = arith.addf %120, %121 : vector<1x80xf32>
    %123 = vector.extract_strided_slice %122 {offsets = [0, 0], sizes = [1, 60], strides = [1, 1]} : vector<1x80xf32> to vector<1x60xf32>
    %cst_40 = arith.constant 5.000000e-01 : f32
    %124 = vector.broadcast %cst_40 : f32 to vector<1x60xf32>
    %125 = arith.mulf %124, %123 : vector<1x60xf32>
    %126 = math.tanh %125 : vector<1x60xf32>
    %cst_41 = arith.constant 5.000000e-01 : f32
    %127 = vector.broadcast %cst_41 : f32 to vector<1x60xf32>
    %128 = arith.mulf %127, %126 : vector<1x60xf32>
    %cst_42 = arith.constant 5.000000e-01 : f32
    %129 = vector.broadcast %cst_42 : f32 to vector<1x60xf32>
    %130 = arith.addf %128, %129 : vector<1x60xf32>
    %131 = vector.extract_strided_slice %122 {offsets = [0, 60], sizes = [1, 20], strides = [1, 1]} : vector<1x80xf32> to vector<1x20xf32>
    %132 = math.tanh %131 : vector<1x20xf32>
    %133 = vector.extract_strided_slice %130 {offsets = [0, 20], sizes = [1, 20], strides = [1, 1]} : vector<1x60xf32> to vector<1x20xf32>
    %134 = arith.mulf %133, %114 : vector<1x20xf32>
    %135 = vector.extract_strided_slice %130 {offsets = [0, 0], sizes = [1, 20], strides = [1, 1]} : vector<1x60xf32> to vector<1x20xf32>
    %136 = arith.mulf %135, %132 : vector<1x20xf32>
    %137 = arith.addf %134, %136 : vector<1x20xf32>
    %138 = vector.extract_strided_slice %130 {offsets = [0, 40], sizes = [1, 20], strides = [1, 1]} : vector<1x60xf32> to vector<1x20xf32>
    %139 = math.tanh %137 : vector<1x20xf32>
    %140 = arith.mulf %138, %139 : vector<1x20xf32>
    %c4_43 = arith.constant 4 : index
    %c0_44 = arith.constant 0 : index
    %141 = vector.load %arg4[%c4_43, %c0_44] : memref<8x20xf32, #tpu.memory_space<vmem>>, vector<1x20xf32>
    tpu.vector_store %arg4[%c4_43, %c0_44], %140 {strides = array<i32>} : memref<8x20xf32, #tpu.memory_space<vmem>>, vector<1x20xf32>,
    %c3_45 = arith.constant 3 : index
    %c0_46 = arith.constant 0 : index
    %142 = vector.load %arg5[%c3_45, %c0_46] : memref<8x20xf32, #tpu.memory_space<vmem>>, vector<1x20xf32>
    tpu.vector_store %arg5[%c3_45, %c0_46], %140 {strides = array<i32>} : memref<8x20xf32, #tpu.memory_space<vmem>>, vector<1x20xf32>,
    %143 = vector.extract_strided_slice %27 {offsets = [5, 0], sizes = [1, 80], strides = [1, 1]} : vector<8x80xf32> to vector<1x80xf32>
    %cst_47 = arith.constant dense<0.000000e+00> : vector<1x80xf32>
    %144 = tpu.matmul %140, %1, %cst_47 {dimension_numbers = #tpu.dot_dimension_numbers<[1], [0], [0], [1], [0, 0, 1, 1], [], []>} : vector<1x20xf32>, vector<20x80xf32>, vector<1x80xf32> -> vector<1x80xf32>
    %145 = arith.addf %143, %144 : vector<1x80xf32>
    %146 = vector.extract_strided_slice %145 {offsets = [0, 0], sizes = [1, 60], strides = [1, 1]} : vector<1x80xf32> to vector<1x60xf32>
    %cst_48 = arith.constant 5.000000e-01 : f32
    %147 = vector.broadcast %cst_48 : f32 to vector<1x60xf32>
    %148 = arith.mulf %147, %146 : vector<1x60xf32>
    %149 = math.tanh %148 : vector<1x60xf32>
    %cst_49 = arith.constant 5.000000e-01 : f32
    %150 = vector.broadcast %cst_49 : f32 to vector<1x60xf32>
    %151 = arith.mulf %150, %149 : vector<1x60xf32>
    %cst_50 = arith.constant 5.000000e-01 : f32
    %152 = vector.broadcast %cst_50 : f32 to vector<1x60xf32>
    %153 = arith.addf %151, %152 : vector<1x60xf32>
    %154 = vector.extract_strided_slice %145 {offsets = [0, 60], sizes = [1, 20], strides = [1, 1]} : vector<1x80xf32> to vector<1x20xf32>
    %155 = math.tanh %154 : vector<1x20xf32>
    %156 = vector.extract_strided_slice %153 {offsets = [0, 20], sizes = [1, 20], strides = [1, 1]} : vector<1x60xf32> to vector<1x20xf32>
    %157 = arith.mulf %156, %137 : vector<1x20xf32>
    %158 = vector.extract_strided_slice %153 {offsets = [0, 0], sizes = [1, 20], strides = [1, 1]} : vector<1x60xf32> to vector<1x20xf32>
    %159 = arith.mulf %158, %155 : vector<1x20xf32>
    %160 = arith.addf %157, %159 : vector<1x20xf32>
    %161 = vector.extract_strided_slice %153 {offsets = [0, 40], sizes = [1, 20], strides = [1, 1]} : vector<1x60xf32> to vector<1x20xf32>
    %162 = math.tanh %160 : vector<1x20xf32>
    %163 = arith.mulf %161, %162 : vector<1x20xf32>
    %c5_51 = arith.constant 5 : index
    %c0_52 = arith.constant 0 : index
    %164 = vector.load %arg4[%c5_51, %c0_52] : memref<8x20xf32, #tpu.memory_space<vmem>>, vector<1x20xf32>
    tpu.vector_store %arg4[%c5_51, %c0_52], %163 {strides = array<i32>} : memref<8x20xf32, #tpu.memory_space<vmem>>, vector<1x20xf32>,
    %c2_53 = arith.constant 2 : index
    %c0_54 = arith.constant 0 : index
    %165 = vector.load %arg5[%c2_53, %c0_54] : memref<8x20xf32, #tpu.memory_space<vmem>>, vector<1x20xf32>
    tpu.vector_store %arg5[%c2_53, %c0_54], %163 {strides = array<i32>} : memref<8x20xf32, #tpu.memory_space<vmem>>, vector<1x20xf32>,
    %166 = vector.extract_strided_slice %27 {offsets = [6, 0], sizes = [1, 80], strides = [1, 1]} : vector<8x80xf32> to vector<1x80xf32>
    %cst_55 = arith.constant dense<0.000000e+00> : vector<1x80xf32>
    %167 = tpu.matmul %163, %1, %cst_55 {dimension_numbers = #tpu.dot_dimension_numbers<[1], [0], [0], [1], [0, 0, 1, 1], [], []>} : vector<1x20xf32>, vector<20x80xf32>, vector<1x80xf32> -> vector<1x80xf32>
    %168 = arith.addf %166, %167 : vector<1x80xf32>
    %169 = vector.extract_strided_slice %168 {offsets = [0, 0], sizes = [1, 60], strides = [1, 1]} : vector<1x80xf32> to vector<1x60xf32>
    %cst_56 = arith.constant 5.000000e-01 : f32
    %170 = vector.broadcast %cst_56 : f32 to vector<1x60xf32>
    %171 = arith.mulf %170, %169 : vector<1x60xf32>
    %172 = math.tanh %171 : vector<1x60xf32>
    %cst_57 = arith.constant 5.000000e-01 : f32
    %173 = vector.broadcast %cst_57 : f32 to vector<1x60xf32>
    %174 = arith.mulf %173, %172 : vector<1x60xf32>
    %cst_58 = arith.constant 5.000000e-01 : f32
    %175 = vector.broadcast %cst_58 : f32 to vector<1x60xf32>
    %176 = arith.addf %174, %175 : vector<1x60xf32>
    %177 = vector.extract_strided_slice %168 {offsets = [0, 60], sizes = [1, 20], strides = [1, 1]} : vector<1x80xf32> to vector<1x20xf32>
    %178 = math.tanh %177 : vector<1x20xf32>
    %179 = vector.extract_strided_slice %176 {offsets = [0, 20], sizes = [1, 20], strides = [1, 1]} : vector<1x60xf32> to vector<1x20xf32>
    %180 = arith.mulf %179, %160 : vector<1x20xf32>
    %181 = vector.extract_strided_slice %176 {offsets = [0, 0], sizes = [1, 20], strides = [1, 1]} : vector<1x60xf32> to vector<1x20xf32>
    %182 = arith.mulf %181, %178 : vector<1x20xf32>
    %183 = arith.addf %180, %182 : vector<1x20xf32>
    %184 = vector.extract_strided_slice %176 {offsets = [0, 40], sizes = [1, 20], strides = [1, 1]} : vector<1x60xf32> to vector<1x20xf32>
    %185 = math.tanh %183 : vector<1x20xf32>
    %186 = arith.mulf %184, %185 : vector<1x20xf32>
    %c6_59 = arith.constant 6 : index
    %c0_60 = arith.constant 0 : index
    %187 = vector.load %arg4[%c6_59, %c0_60] : memref<8x20xf32, #tpu.memory_space<vmem>>, vector<1x20xf32>
    tpu.vector_store %arg4[%c6_59, %c0_60], %186 {strides = array<i32>} : memref<8x20xf32, #tpu.memory_space<vmem>>, vector<1x20xf32>,
    %c1_61 = arith.constant 1 : index
    %c0_62 = arith.constant 0 : index
    %188 = vector.load %arg5[%c1_61, %c0_62] : memref<8x20xf32, #tpu.memory_space<vmem>>, vector<1x20xf32>
    tpu.vector_store %arg5[%c1_61, %c0_62], %186 {strides = array<i32>} : memref<8x20xf32, #tpu.memory_space<vmem>>, vector<1x20xf32>,
    %189 = vector.extract_strided_slice %27 {offsets = [7, 0], sizes = [1, 80], strides = [1, 1]} : vector<8x80xf32> to vector<1x80xf32>
    %cst_63 = arith.constant dense<0.000000e+00> : vector<1x80xf32>
    %190 = tpu.matmul %186, %1, %cst_63 {dimension_numbers = #tpu.dot_dimension_numbers<[1], [0], [0], [1], [0, 0, 1, 1], [], []>} : vector<1x20xf32>, vector<20x80xf32>, vector<1x80xf32> -> vector<1x80xf32>
    %191 = arith.addf %189, %190 : vector<1x80xf32>
    %192 = vector.extract_strided_slice %191 {offsets = [0, 0], sizes = [1, 60], strides = [1, 1]} : vector<1x80xf32> to vector<1x60xf32>
    %cst_64 = arith.constant 5.000000e-01 : f32
    %193 = vector.broadcast %cst_64 : f32 to vector<1x60xf32>
    %194 = arith.mulf %193, %192 : vector<1x60xf32>
    %195 = math.tanh %194 : vector<1x60xf32>
    %cst_65 = arith.constant 5.000000e-01 : f32
    %196 = vector.broadcast %cst_65 : f32 to vector<1x60xf32>
    %197 = arith.mulf %196, %195 : vector<1x60xf32>
    %cst_66 = arith.constant 5.000000e-01 : f32
    %198 = vector.broadcast %cst_66 : f32 to vector<1x60xf32>
    %199 = arith.addf %197, %198 : vector<1x60xf32>
    %200 = vector.extract_strided_slice %191 {offsets = [0, 60], sizes = [1, 20], strides = [1, 1]} : vector<1x80xf32> to vector<1x20xf32>
    %201 = math.tanh %200 : vector<1x20xf32>
    %202 = vector.extract_strided_slice %199 {offsets = [0, 20], sizes = [1, 20], strides = [1, 1]} : vector<1x60xf32> to vector<1x20xf32>
    %203 = arith.mulf %202, %183 : vector<1x20xf32>
    %204 = vector.extract_strided_slice %199 {offsets = [0, 0], sizes = [1, 20], strides = [1, 1]} : vector<1x60xf32> to vector<1x20xf32>
    %205 = arith.mulf %204, %201 : vector<1x20xf32>
    %206 = arith.addf %203, %205 : vector<1x20xf32>
    %207 = vector.extract_strided_slice %199 {offsets = [0, 40], sizes = [1, 20], strides = [1, 1]} : vector<1x60xf32> to vector<1x20xf32>
    %208 = math.tanh %206 : vector<1x20xf32>
    %209 = arith.mulf %207, %208 : vector<1x20xf32>
    %c7_67 = arith.constant 7 : index
    %c0_68 = arith.constant 0 : index
    %210 = vector.load %arg4[%c7_67, %c0_68] : memref<8x20xf32, #tpu.memory_space<vmem>>, vector<1x20xf32>
    tpu.vector_store %arg4[%c7_67, %c0_68], %209 {strides = array<i32>} : memref<8x20xf32, #tpu.memory_space<vmem>>, vector<1x20xf32>,
    %c0_69 = arith.constant 0 : index
    %c0_70 = arith.constant 0 : index
    %211 = vector.load %arg5[%c0_69, %c0_70] : memref<8x20xf32, #tpu.memory_space<vmem>>, vector<1x20xf32>
    tpu.vector_store %arg5[%c0_69, %c0_70], %209 {strides = array<i32>} : memref<8x20xf32, #tpu.memory_space<vmem>>, vector<1x20xf32>,
    %c0_71 = arith.constant 0 : index
    %c0_72 = arith.constant 0 : index
    %212 = vector.load %arg4[%c0_71, %c0_72] : memref<8x20xf32, #tpu.memory_space<vmem>>, vector<8x20xf32>
    %cst_73 = arith.constant dense<0.000000e+00> : vector<8x17xf32>
    %213 = tpu.matmul %212, %4, %cst_73 {dimension_numbers = #tpu.dot_dimension_numbers<[1], [0], [0], [1], [0, 0, 1, 1], [], []>} : vector<8x20xf32>, vector<20x17xf32>, vector<8x17xf32> -> vector<8x17xf32>
    %c0_74 = arith.constant 0 : index
    %c0_75 = arith.constant 0 : index
    %214 = vector.load %arg5[%c0_74, %c0_75] : memref<8x20xf32, #tpu.memory_space<vmem>>, vector<8x20xf32>
    %cst_76 = arith.constant dense<0.000000e+00> : vector<8x17xf32>
    %215 = tpu.matmul %214, %5, %cst_76 {dimension_numbers = #tpu.dot_dimension_numbers<[1], [0], [0], [1], [0, 0, 1, 1], [], []>} : vector<8x20xf32>, vector<20x17xf32>, vector<8x17xf32> -> vector<8x17xf32>
    %216 = arith.addf %213, %215 : vector<8x17xf32>
    %217 = vector.broadcast %6 : vector<1x17xf32> to vector<8x17xf32>
    %218 = arith.addf %216, %217 : vector<8x17xf32>
    %219 = tpu.iota {dimensions = array<i32: 0>} : vector<17x17xi32>
    %220 = tpu.iota {dimensions = array<i32: 1>} : vector<17x17xi32>
    %221 = tpu.iota {dimensions = array<i32: 1>} : vector<1x17xi32>
    %222 = tpu.iota {dimensions = array<i32: 0>} : vector<17x1xi32>
    %223 = arith.cmpi eq, %219, %220 : vector<17x17xi32>
    %224 = arith.extui %223 : vector<17x17xi1> to vector<17x17xi32>
    %225 = arith.sitofp %224 : vector<17x17xi32> to vector<17x17xf32>
    %226 = vector.extract_strided_slice %218 {offsets = [1, 0], sizes = [1, 17], strides = [1, 1]} : vector<8x17xf32> to vector<1x17xf32>
    %227 = vector.broadcast %226 : vector<1x17xf32> to vector<17x17xf32>
    %228 = arith.mulf %225, %227 : vector<17x17xf32>
    %cst_77 = arith.constant dense<0.000000e+00> : vector<17xf32>
    %229 = vector.multi_reduction <add>, %228, %cst_77 [1] : vector<17x17xf32> to vector<17xf32>
    %230 = vector.shape_cast %229 : vector<17xf32> to vector<17x1xf32>
    %231 = vector.extract_strided_slice %218 {offsets = [3, 0], sizes = [1, 17], strides = [1, 1]} : vector<8x17xf32> to vector<1x17xf32>
    %232 = vector.broadcast %231 : vector<1x17xf32> to vector<17x17xf32>
    %233 = arith.mulf %225, %232 : vector<17x17xf32>
    %cst_78 = arith.constant dense<0.000000e+00> : vector<17xf32>
    %234 = vector.multi_reduction <add>, %233, %cst_78 [1] : vector<17x17xf32> to vector<17xf32>
    %235 = vector.shape_cast %234 : vector<17xf32> to vector<17x1xf32>
    %236 = vector.extract_strided_slice %218 {offsets = [5, 0], sizes = [1, 17], strides = [1, 1]} : vector<8x17xf32> to vector<1x17xf32>
    %237 = vector.broadcast %236 : vector<1x17xf32> to vector<17x17xf32>
    %238 = arith.mulf %225, %237 : vector<17x17xf32>
    %cst_79 = arith.constant dense<0.000000e+00> : vector<17xf32>
    %239 = vector.multi_reduction <add>, %238, %cst_79 [1] : vector<17x17xf32> to vector<17xf32>
    %240 = vector.shape_cast %239 : vector<17xf32> to vector<17x1xf32>
    %241 = vector.extract_strided_slice %218 {offsets = [7, 0], sizes = [1, 17], strides = [1, 1]} : vector<8x17xf32> to vector<1x17xf32>
    %242 = vector.broadcast %241 : vector<1x17xf32> to vector<17x17xf32>
    %243 = arith.mulf %225, %242 : vector<17x17xf32>
    %cst_80 = arith.constant dense<0.000000e+00> : vector<17xf32>
    %244 = vector.multi_reduction <add>, %243, %cst_80 [1] : vector<17x17xf32> to vector<17xf32>
    %245 = vector.shape_cast %244 : vector<17xf32> to vector<17x1xf32>
    %c15_i32 = arith.constant 15 : i32
    %246 = vector.broadcast %c15_i32 : i32 to vector<17x1xi32>
    %247 = arith.cmpi eq, %222, %246 : vector<17x1xi32>
    %cst_81 = arith.constant 0.000000e+00 : f32
    %cst_82 = arith.constant -1.000000e+04 : f32
    %248 = vector.broadcast %cst_81 : f32 to vector<17x1xf32>
    %249 = vector.broadcast %cst_82 : f32 to vector<17x1xf32>
    %250 = arith.select %247, %248, %249 : vector<17x1xi1>, vector<17x1xf32>
    %251 = vector.broadcast %250 : vector<17x1xf32> to vector<17x17xf32>
    %252 = arith.addf %7, %251 : vector<17x17xf32>
    %cst_83 = arith.constant dense<0xFF800000> : vector<17xf32>
    %253 = vector.multi_reduction <maximumf>, %252, %cst_83 [0] : vector<17x17xf32> to vector<17xf32>
    %254 = vector.shape_cast %253 : vector<17xf32> to vector<1x17xf32>
    %255 = vector.broadcast %254 : vector<1x17xf32> to vector<17x17xf32>
    %256 = arith.cmpf oeq, %252, %255 : vector<17x17xf32>
    %c17_i32 = arith.constant 17 : i32
    %257 = vector.broadcast %c17_i32 : i32 to vector<17x17xi32>
    %258 = arith.select %256, %219, %257 : vector<17x17xi1>, vector<17x17xi32>
    %cst_84 = arith.constant dense<2147483647> : vector<17xi32>
    %259 = vector.multi_reduction <minsi>, %258, %cst_84 [0] : vector<17x17xi32> to vector<17xi32>
    %260 = vector.shape_cast %259 : vector<17xi32> to vector<1x17xi32>
    %261 = vector.extract_strided_slice %218 {offsets = [0, 0], sizes = [1, 17], strides = [1, 1]} : vector<8x17xf32> to vector<1x17xf32>
    %262 = arith.addf %254, %261 : vector<1x17xf32>
    %263 = vector.broadcast %262 : vector<1x17xf32> to vector<17x17xf32>
    %264 = arith.addf %8, %263 : vector<17x17xf32>
    %cst_85 = arith.constant dense<0xFF800000> : vector<17xf32>
    %265 = vector.multi_reduction <maximumf>, %264, %cst_85 [1] : vector<17x17xf32> to vector<17xf32>
    %266 = vector.shape_cast %265 : vector<17xf32> to vector<17x1xf32>
    %267 = vector.broadcast %266 : vector<17x1xf32> to vector<17x17xf32>
    %268 = arith.cmpf oeq, %264, %267 : vector<17x17xf32>
    %c17_i32_86 = arith.constant 17 : i32
    %269 = vector.broadcast %c17_i32_86 : i32 to vector<17x17xi32>
    %270 = arith.select %268, %220, %269 : vector<17x17xi1>, vector<17x17xi32>
    %cst_87 = arith.constant dense<2147483647> : vector<17xi32>
    %271 = vector.multi_reduction <minsi>, %270, %cst_87 [1] : vector<17x17xi32> to vector<17xi32>
    %272 = vector.shape_cast %271 : vector<17xi32> to vector<17x1xi32>
    %273 = arith.addf %266, %230 : vector<17x1xf32>
    %274 = vector.broadcast %273 : vector<17x1xf32> to vector<17x17xf32>
    %275 = arith.addf %7, %274 : vector<17x17xf32>
    %cst_88 = arith.constant dense<0xFF800000> : vector<17xf32>
    %276 = vector.multi_reduction <maximumf>, %275, %cst_88 [0] : vector<17x17xf32> to vector<17xf32>
    %277 = vector.shape_cast %276 : vector<17xf32> to vector<1x17xf32>
    %278 = vector.broadcast %277 : vector<1x17xf32> to vector<17x17xf32>
    %279 = arith.cmpf oeq, %275, %278 : vector<17x17xf32>
    %c17_i32_89 = arith.constant 17 : i32
    %280 = vector.broadcast %c17_i32_89 : i32 to vector<17x17xi32>
    %281 = arith.select %279, %219, %280 : vector<17x17xi1>, vector<17x17xi32>
    %cst_90 = arith.constant dense<2147483647> : vector<17xi32>
    %282 = vector.multi_reduction <minsi>, %281, %cst_90 [0] : vector<17x17xi32> to vector<17xi32>
    %283 = vector.shape_cast %282 : vector<17xi32> to vector<1x17xi32>
    %284 = vector.extract_strided_slice %218 {offsets = [2, 0], sizes = [1, 17], strides = [1, 1]} : vector<8x17xf32> to vector<1x17xf32>
    %285 = arith.addf %277, %284 : vector<1x17xf32>
    %286 = vector.broadcast %285 : vector<1x17xf32> to vector<17x17xf32>
    %287 = arith.addf %8, %286 : vector<17x17xf32>
    %cst_91 = arith.constant dense<0xFF800000> : vector<17xf32>
    %288 = vector.multi_reduction <maximumf>, %287, %cst_91 [1] : vector<17x17xf32> to vector<17xf32>
    %289 = vector.shape_cast %288 : vector<17xf32> to vector<17x1xf32>
    %290 = vector.broadcast %289 : vector<17x1xf32> to vector<17x17xf32>
    %291 = arith.cmpf oeq, %287, %290 : vector<17x17xf32>
    %c17_i32_92 = arith.constant 17 : i32
    %292 = vector.broadcast %c17_i32_92 : i32 to vector<17x17xi32>
    %293 = arith.select %291, %220, %292 : vector<17x17xi1>, vector<17x17xi32>
    %cst_93 = arith.constant dense<2147483647> : vector<17xi32>
    %294 = vector.multi_reduction <minsi>, %293, %cst_93 [1] : vector<17x17xi32> to vector<17xi32>
    %295 = vector.shape_cast %294 : vector<17xi32> to vector<17x1xi32>
    %296 = arith.addf %289, %235 : vector<17x1xf32>
    %297 = vector.broadcast %296 : vector<17x1xf32> to vector<17x17xf32>
    %298 = arith.addf %7, %297 : vector<17x17xf32>
    %cst_94 = arith.constant dense<0xFF800000> : vector<17xf32>
    %299 = vector.multi_reduction <maximumf>, %298, %cst_94 [0] : vector<17x17xf32> to vector<17xf32>
    %300 = vector.shape_cast %299 : vector<17xf32> to vector<1x17xf32>
    %301 = vector.broadcast %300 : vector<1x17xf32> to vector<17x17xf32>
    %302 = arith.cmpf oeq, %298, %301 : vector<17x17xf32>
    %c17_i32_95 = arith.constant 17 : i32
    %303 = vector.broadcast %c17_i32_95 : i32 to vector<17x17xi32>
    %304 = arith.select %302, %219, %303 : vector<17x17xi1>, vector<17x17xi32>
    %cst_96 = arith.constant dense<2147483647> : vector<17xi32>
    %305 = vector.multi_reduction <minsi>, %304, %cst_96 [0] : vector<17x17xi32> to vector<17xi32>
    %306 = vector.shape_cast %305 : vector<17xi32> to vector<1x17xi32>
    %307 = vector.extract_strided_slice %218 {offsets = [4, 0], sizes = [1, 17], strides = [1, 1]} : vector<8x17xf32> to vector<1x17xf32>
    %308 = arith.addf %300, %307 : vector<1x17xf32>
    %309 = vector.broadcast %308 : vector<1x17xf32> to vector<17x17xf32>
    %310 = arith.addf %8, %309 : vector<17x17xf32>
    %cst_97 = arith.constant dense<0xFF800000> : vector<17xf32>
    %311 = vector.multi_reduction <maximumf>, %310, %cst_97 [1] : vector<17x17xf32> to vector<17xf32>
    %312 = vector.shape_cast %311 : vector<17xf32> to vector<17x1xf32>
    %313 = vector.broadcast %312 : vector<17x1xf32> to vector<17x17xf32>
    %314 = arith.cmpf oeq, %310, %313 : vector<17x17xf32>
    %c17_i32_98 = arith.constant 17 : i32
    %315 = vector.broadcast %c17_i32_98 : i32 to vector<17x17xi32>
    %316 = arith.select %314, %220, %315 : vector<17x17xi1>, vector<17x17xi32>
    %cst_99 = arith.constant dense<2147483647> : vector<17xi32>
    %317 = vector.multi_reduction <minsi>, %316, %cst_99 [1] : vector<17x17xi32> to vector<17xi32>
    %318 = vector.shape_cast %317 : vector<17xi32> to vector<17x1xi32>
    %319 = arith.addf %312, %240 : vector<17x1xf32>
    %320 = vector.broadcast %319 : vector<17x1xf32> to vector<17x17xf32>
    %321 = arith.addf %7, %320 : vector<17x17xf32>
    %cst_100 = arith.constant dense<0xFF800000> : vector<17xf32>
    %322 = vector.multi_reduction <maximumf>, %321, %cst_100 [0] : vector<17x17xf32> to vector<17xf32>
    %323 = vector.shape_cast %322 : vector<17xf32> to vector<1x17xf32>
    %324 = vector.broadcast %323 : vector<1x17xf32> to vector<17x17xf32>
    %325 = arith.cmpf oeq, %321, %324 : vector<17x17xf32>
    %c17_i32_101 = arith.constant 17 : i32
    %326 = vector.broadcast %c17_i32_101 : i32 to vector<17x17xi32>
    %327 = arith.select %325, %219, %326 : vector<17x17xi1>, vector<17x17xi32>
    %cst_102 = arith.constant dense<2147483647> : vector<17xi32>
    %328 = vector.multi_reduction <minsi>, %327, %cst_102 [0] : vector<17x17xi32> to vector<17xi32>
    %329 = vector.shape_cast %328 : vector<17xi32> to vector<1x17xi32>
    %330 = vector.extract_strided_slice %218 {offsets = [6, 0], sizes = [1, 17], strides = [1, 1]} : vector<8x17xf32> to vector<1x17xf32>
    %331 = arith.addf %323, %330 : vector<1x17xf32>
    %332 = vector.broadcast %331 : vector<1x17xf32> to vector<17x17xf32>
    %333 = arith.addf %8, %332 : vector<17x17xf32>
    %cst_103 = arith.constant dense<0xFF800000> : vector<17xf32>
    %334 = vector.multi_reduction <maximumf>, %333, %cst_103 [1] : vector<17x17xf32> to vector<17xf32>
    %335 = vector.shape_cast %334 : vector<17xf32> to vector<17x1xf32>
    %336 = vector.broadcast %335 : vector<17x1xf32> to vector<17x17xf32>
    %337 = arith.cmpf oeq, %333, %336 : vector<17x17xf32>
    %c17_i32_104 = arith.constant 17 : i32
    %338 = vector.broadcast %c17_i32_104 : i32 to vector<17x17xi32>
    %339 = arith.select %337, %220, %338 : vector<17x17xi1>, vector<17x17xi32>
    %cst_105 = arith.constant dense<2147483647> : vector<17xi32>
    %340 = vector.multi_reduction <minsi>, %339, %cst_105 [1] : vector<17x17xi32> to vector<17xi32>
    %341 = vector.shape_cast %340 : vector<17xi32> to vector<17x1xi32>
    %342 = arith.addf %335, %245 : vector<17x1xf32>
    %343 = arith.addf %342, %9 : vector<17x1xf32>
    %cst_106 = arith.constant dense<0xFF800000> : vector<1xf32>
    %344 = vector.multi_reduction <maximumf>, %343, %cst_106 [0] : vector<17x1xf32> to vector<1xf32>
    %345 = vector.shape_cast %344 : vector<1xf32> to vector<1x1xf32>
    %346 = vector.broadcast %345 : vector<1x1xf32> to vector<17x1xf32>
    %347 = arith.cmpf oeq, %343, %346 : vector<17x1xf32>
    %c17_i32_107 = arith.constant 17 : i32
    %348 = vector.broadcast %c17_i32_107 : i32 to vector<17x1xi32>
    %349 = arith.select %347, %222, %348 : vector<17x1xi1>, vector<17x1xi32>
    %cst_108 = arith.constant dense<2147483647> : vector<1xi32>
    %350 = vector.multi_reduction <minsi>, %349, %cst_108 [0] : vector<17x1xi32> to vector<1xi32>
    %351 = vector.shape_cast %350 : vector<1xi32> to vector<1x1xi32>
    %352 = tpu.iota {dimensions = array<i32: 1>} : vector<1x128xi32>
    %c0_i32 = arith.constant 0 : i32
    %353 = vector.broadcast %c0_i32 : i32 to vector<1x128xi32>
    %354 = arith.cmpi eq, %352, %353 : vector<1x128xi32>
    %cst_109 = arith.constant 0.000000e+00 : f32
    %355 = vector.shape_cast %345 : vector<1x1xf32> to vector<1x1xf32>
    %356 = vector.broadcast %355 : vector<1x1xf32> to vector<1x128xf32>
    %357 = vector.broadcast %cst_109 : f32 to vector<1x128xf32>
    %358 = arith.select %354, %356, %357 : vector<1x128xi1>, vector<1x128xf32>
    %359 = tpu.bitcast %358 : vector<1x128xf32> -> vector<1x128xi32>
    %c8_i32 = arith.constant 8 : i32
    %360 = vector.broadcast %c8_i32 : i32 to vector<1x128xi32>
    %361 = arith.cmpi eq, %352, %360 : vector<1x128xi32>
    %362 = vector.shape_cast %351 : vector<1x1xi32> to vector<1x1xi32>
    %363 = vector.broadcast %362 : vector<1x1xi32> to vector<1x128xi32>
    %364 = arith.select %361, %363, %359 : vector<1x128xi1>, vector<1x128xi32>
    %365 = vector.broadcast %351 : vector<1x1xi32> to vector<17x1xi32>
    %366 = arith.cmpi eq, %222, %365 : vector<17x1xi32>
    %c0_i32_110 = arith.constant 0 : i32
    %367 = vector.broadcast %c0_i32_110 : i32 to vector<17x1xi32>
    %368 = arith.select %366, %341, %367 : vector<17x1xi1>, vector<17x1xi32>
    %cst_111 = arith.constant dense<0> : vector<1xi32>
    %369 = vector.multi_reduction <add>, %368, %cst_111 [0] : vector<17x1xi32> to vector<1xi32>
    %370 = vector.shape_cast %369 : vector<1xi32> to vector<1x1xi32>
    %c7_i32 = arith.constant 7 : i32
    %371 = vector.broadcast %c7_i32 : i32 to vector<1x128xi32>
    %372 = arith.cmpi eq, %352, %371 : vector<1x128xi32>
    %373 = vector.shape_cast %370 : vector<1x1xi32> to vector<1x1xi32>
    %374 = vector.broadcast %373 : vector<1x1xi32> to vector<1x128xi32>
    %375 = arith.select %372, %374, %364 : vector<1x128xi1>, vector<1x128xi32>
    %376 = vector.broadcast %370 : vector<1x1xi32> to vector<1x17xi32>
    %377 = arith.cmpi eq, %221, %376 : vector<1x17xi32>
    %c0_i32_112 = arith.constant 0 : i32
    %378 = vector.broadcast %c0_i32_112 : i32 to vector<1x17xi32>
    %379 = arith.select %377, %329, %378 : vector<1x17xi1>, vector<1x17xi32>
    %cst_113 = arith.constant dense<0> : vector<1xi32>
    %380 = vector.multi_reduction <add>, %379, %cst_113 [1] : vector<1x17xi32> to vector<1xi32>
    %381 = vector.shape_cast %380 : vector<1xi32> to vector<1x1xi32>
    %c6_i32 = arith.constant 6 : i32
    %382 = vector.broadcast %c6_i32 : i32 to vector<1x128xi32>
    %383 = arith.cmpi eq, %352, %382 : vector<1x128xi32>
    %384 = vector.shape_cast %381 : vector<1x1xi32> to vector<1x1xi32>
    %385 = vector.broadcast %384 : vector<1x1xi32> to vector<1x128xi32>
    %386 = arith.select %383, %385, %375 : vector<1x128xi1>, vector<1x128xi32>
    %387 = vector.broadcast %381 : vector<1x1xi32> to vector<17x1xi32>
    %388 = arith.cmpi eq, %222, %387 : vector<17x1xi32>
    %c0_i32_114 = arith.constant 0 : i32
    %389 = vector.broadcast %c0_i32_114 : i32 to vector<17x1xi32>
    %390 = arith.select %388, %318, %389 : vector<17x1xi1>, vector<17x1xi32>
    %cst_115 = arith.constant dense<0> : vector<1xi32>
    %391 = vector.multi_reduction <add>, %390, %cst_115 [0] : vector<17x1xi32> to vector<1xi32>
    %392 = vector.shape_cast %391 : vector<1xi32> to vector<1x1xi32>
    %c5_i32 = arith.constant 5 : i32
    %393 = vector.broadcast %c5_i32 : i32 to vector<1x128xi32>
    %394 = arith.cmpi eq, %352, %393 : vector<1x128xi32>
    %395 = vector.shape_cast %392 : vector<1x1xi32> to vector<1x1xi32>
    %396 = vector.broadcast %395 : vector<1x1xi32> to vector<1x128xi32>
    %397 = arith.select %394, %396, %386 : vector<1x128xi1>, vector<1x128xi32>
    %398 = vector.broadcast %392 : vector<1x1xi32> to vector<1x17xi32>
    %399 = arith.cmpi eq, %221, %398 : vector<1x17xi32>
    %c0_i32_116 = arith.constant 0 : i32
    %400 = vector.broadcast %c0_i32_116 : i32 to vector<1x17xi32>
    %401 = arith.select %399, %306, %400 : vector<1x17xi1>, vector<1x17xi32>
    %cst_117 = arith.constant dense<0> : vector<1xi32>
    %402 = vector.multi_reduction <add>, %401, %cst_117 [1] : vector<1x17xi32> to vector<1xi32>
    %403 = vector.shape_cast %402 : vector<1xi32> to vector<1x1xi32>
    %c4_i32 = arith.constant 4 : i32
    %404 = vector.broadcast %c4_i32 : i32 to vector<1x128xi32>
    %405 = arith.cmpi eq, %352, %404 : vector<1x128xi32>
    %406 = vector.shape_cast %403 : vector<1x1xi32> to vector<1x1xi32>
    %407 = vector.broadcast %406 : vector<1x1xi32> to vector<1x128xi32>
    %408 = arith.select %405, %407, %397 : vector<1x128xi1>, vector<1x128xi32>
    %409 = vector.broadcast %403 : vector<1x1xi32> to vector<17x1xi32>
    %410 = arith.cmpi eq, %222, %409 : vector<17x1xi32>
    %c0_i32_118 = arith.constant 0 : i32
    %411 = vector.broadcast %c0_i32_118 : i32 to vector<17x1xi32>
    %412 = arith.select %410, %295, %411 : vector<17x1xi1>, vector<17x1xi32>
    %cst_119 = arith.constant dense<0> : vector<1xi32>
    %413 = vector.multi_reduction <add>, %412, %cst_119 [0] : vector<17x1xi32> to vector<1xi32>
    %414 = vector.shape_cast %413 : vector<1xi32> to vector<1x1xi32>
    %c3_i32 = arith.constant 3 : i32
    %415 = vector.broadcast %c3_i32 : i32 to vector<1x128xi32>
    %416 = arith.cmpi eq, %352, %415 : vector<1x128xi32>
    %417 = vector.shape_cast %414 : vector<1x1xi32> to vector<1x1xi32>
    %418 = vector.broadcast %417 : vector<1x1xi32> to vector<1x128xi32>
    %419 = arith.select %416, %418, %408 : vector<1x128xi1>, vector<1x128xi32>
    %420 = vector.broadcast %414 : vector<1x1xi32> to vector<1x17xi32>
    %421 = arith.cmpi eq, %221, %420 : vector<1x17xi32>
    %c0_i32_120 = arith.constant 0 : i32
    %422 = vector.broadcast %c0_i32_120 : i32 to vector<1x17xi32>
    %423 = arith.select %421, %283, %422 : vector<1x17xi1>, vector<1x17xi32>
    %cst_121 = arith.constant dense<0> : vector<1xi32>
    %424 = vector.multi_reduction <add>, %423, %cst_121 [1] : vector<1x17xi32> to vector<1xi32>
    %425 = vector.shape_cast %424 : vector<1xi32> to vector<1x1xi32>
    %c2_i32 = arith.constant 2 : i32
    %426 = vector.broadcast %c2_i32 : i32 to vector<1x128xi32>
    %427 = arith.cmpi eq, %352, %426 : vector<1x128xi32>
    %428 = vector.shape_cast %425 : vector<1x1xi32> to vector<1x1xi32>
    %429 = vector.broadcast %428 : vector<1x1xi32> to vector<1x128xi32>
    %430 = arith.select %427, %429, %419 : vector<1x128xi1>, vector<1x128xi32>
    %431 = vector.broadcast %425 : vector<1x1xi32> to vector<17x1xi32>
    %432 = arith.cmpi eq, %222, %431 : vector<17x1xi32>
    %c0_i32_122 = arith.constant 0 : i32
    %433 = vector.broadcast %c0_i32_122 : i32 to vector<17x1xi32>
    %434 = arith.select %432, %272, %433 : vector<17x1xi1>, vector<17x1xi32>
    %cst_123 = arith.constant dense<0> : vector<1xi32>
    %435 = vector.multi_reduction <add>, %434, %cst_123 [0] : vector<17x1xi32> to vector<1xi32>
    %436 = vector.shape_cast %435 : vector<1xi32> to vector<1x1xi32>
    %c1_i32 = arith.constant 1 : i32
    %437 = vector.broadcast %c1_i32 : i32 to vector<1x128xi32>
    %438 = arith.cmpi eq, %352, %437 : vector<1x128xi32>
    %439 = vector.shape_cast %436 : vector<1x1xi32> to vector<1x1xi32>
    %440 = vector.broadcast %439 : vector<1x1xi32> to vector<1x128xi32>
    %441 = arith.select %438, %440, %430 : vector<1x128xi1>, vector<1x128xi32>
    %442 = vector.broadcast %436 : vector<1x1xi32> to vector<1x17xi32>
    %443 = arith.cmpi eq, %221, %442 : vector<1x17xi32>
    %c0_i32_124 = arith.constant 0 : i32
    %444 = vector.broadcast %c0_i32_124 : i32 to vector<1x17xi32>
    %445 = arith.select %443, %260, %444 : vector<1x17xi1>, vector<1x17xi32>
    %cst_125 = arith.constant dense<0> : vector<1xi32>
    %446 = vector.multi_reduction <add>, %445, %cst_125 [1] : vector<1x17xi32> to vector<1xi32>
    %447 = vector.shape_cast %446 : vector<1xi32> to vector<1x1xi32>
    %c9_i32 = arith.constant 9 : i32
    %448 = vector.broadcast %c9_i32 : i32 to vector<1x128xi32>
    %449 = arith.cmpi eq, %352, %448 : vector<1x128xi32>
    %450 = vector.shape_cast %447 : vector<1x1xi32> to vector<1x1xi32>
    %451 = vector.broadcast %450 : vector<1x1xi32> to vector<1x128xi32>
    %452 = arith.select %449, %451, %441 : vector<1x128xi1>, vector<1x128xi32>
    %c0_126 = arith.constant 0 : index
    %c0_127 = arith.constant 0 : index
    %c0_128 = arith.constant 0 : index
    %453 = vector.load %arg3[%c0_126, %c0_127, %c0_128] : memref<1x1x128xi32, #tpu.memory_space<vmem>>, vector<1x1x128xi32>
    %454 = vector.shape_cast %453 : vector<1x1x128xi32> to vector<1x128xi32>
    %455 = vector.shape_cast %452 : vector<1x128xi32> to vector<1x1x128xi32>
    tpu.vector_store %arg3[%c0_126, %c0_127, %c0_128], %455 {strides = array<i32>} : memref<1x1x128xi32, #tpu.memory_space<vmem>>, vector<1x1x128xi32>,
    return
  }
  func.func @transform_0(%arg0: i32) -> (i32, i32, i32) {
    %c0_i32 = arith.constant 0 : i32
    %c0_i32_0 = arith.constant 0 : i32
    %c0_i32_1 = arith.constant 0 : i32
    return %arg0, %c0_i32, %c0_i32_0 : i32, i32, i32
  }
  func.func @transform_1(%arg0: i32) -> (i32, i32) {
    %c0_i32 = arith.constant 0 : i32
    %c0_i32_0 = arith.constant 0 : i32
    %c0_i32_1 = arith.constant 0 : i32
    return %c0_i32, %c0_i32_0 : i32, i32
  }
  func.func @transform_2(%arg0: i32) -> (i32, i32, i32) {
    %c0_i32 = arith.constant 0 : i32
    %c0_i32_0 = arith.constant 0 : i32
    %c0_i32_1 = arith.constant 0 : i32
    return %arg0, %c0_i32, %c0_i32_0 : i32, i32, i32
  }
}

</mosaic_0001>

<llo_original>
// kernel: _forward.1
$region0: #{_forward.1}
  #allocation0 [shape = 'u32[]', space=smem, size = 0x4, offset = 0x4, fixed_abs, tag = 'smem constant byte address 0x4 - core index']
  #allocation1 [shape = 'u32[144,128]{1,0:T(1,128)}', space=vmem, size = 0x12000, scoped, tag = 'internal scratch']
  #allocation2 [shape = 'f32[8,20]{1,0:T(8,128)}', space=vmem, size = 0x1000, scoped, tag = 'scratch operand']
  #allocation3 [shape = 'f32[8,20]{1,0:T(8,128)}', space=vmem, size = 0x1000, scoped, tag = 'scratch operand']
  %s0 = inlined_call_operand.vmem [shape: s32[4,8,2], index: 0, kind: input, shape index: {}]
  %s1 = inlined_call_operand.hbm [shape: f32[280,128], index: 1, kind: input, shape index: {}]
  %s2 = inlined_call_operand.vmem [shape: s32[4,1,128], index: 2, kind: output, shape index: {}]
  %s3 = sld [smem:[#allocation0]]
  $region45: #{_forward.1} parent=0
    _
  %s5 = ssub.s32 1, %s3
  %s6 = scalar_select 0, %s5, %s3
  $region1: #{_forward.1} parent=0
    #allocation4 [shape = 'u8[143360]{0}', space=vmem, size = 0x23000, scoped, tag = 'input window, operand 1, single buffered']
    #allocation5 [shape = 's32[2]{0}', space=sflag, size = 0x8, scoped, tag = 'scoped memory for _forward.1']
    %7 = vsyncpa [#allocation5], 0
    loop: start=0, step=1, limit=6
    $region2: #{_forward.1} parent=1 // loop_pre_header
      _
    $region3: #{_forward.1} parent=1 // loop_header
      %s9 = sphi 0, %s13
      %p10 = scmp.ge.s32.totalorder %s9, 6
      %s19 = sphi 0, %s21
      %s22 = sphi 0, %s19
      %s23 = sphi 0, %s22
      %s39 = sphi 0, %s23
      %s43 = sphi 0, %s43
      %s45 = sphi 0, %s43
      %s46 = sphi 0, %s45
      %s60 = sphi 0, %s46
      %s66 = sphi 0, %s68
      %s69 = sphi 0, %s66
      %s70 = sphi 0, %s69
      %s86 = sphi 0, %s70
    $region4: #{_forward.1} parent=1 // loop_header_branch
      %12 = sbr.rel (%p10) target = $region8
    $region5: #{_forward.1} parent=1 // loop_body
      %s14 = ssub.s32 %s9, 1
      %s15 = ssub.s32 %s9, 2
      %s16 = sadd.s32 %s9, 1
      %s17 = ssub.s32 %s9, %s16
      %p18 = scmp.eq.s32.totalorder %s17, 0
      %s20 = sadd.s32 %s19, 1
      %s21 = scalar_select %p18, %s19, %s20
      %p24 = pneg %p18
      %p25 = scmp.eq.s32.totalorder %s9, 3
      %p26 = por %p24, %p25
      %p27 = scmp.ne.s32.totalorder %s19, %s22
      %p28 = scmp.eq.s32.totalorder %s9, 0
      %p29 = por %p27, %p28
      %p30 = scmp.ne.s32.totalorder %s19, %s22
      %p31 = scmp.eq.s32.totalorder %s14, 3
      %p32 = por %p30, %p31
      %p33 = scmp.ne.s32.totalorder %s22, %s23
      %p34 = scmp.eq.s32.totalorder %s14, 0
      %p35 = por %p33, %p34
      %p36 = scmp.ne.s32.totalorder %s22, %s23
      %p37 = scmp.eq.s32.totalorder %s15, 3
      %p38 = por %p36, %p37
      %p40 = scmp.ne.s32.totalorder %s23, %s39
      %p41 = scmp.eq.s32.totalorder %s15, 0
      %p42 = por %p40, %p41
      %s44 = sadd.s32 %s43, 1
      %p47 = scmp.eq.s32.totalorder %s9, 3
      %p48 = scmp.ne.s32.totalorder %s43, %s45
      %p49 = scmp.eq.s32.totalorder %s9, 0
      %p50 = por %p48, %p49
      %p51 = scmp.ne.s32.totalorder %s43, %s45
      %p52 = scmp.eq.s32.totalorder %s14, 3
      %p53 = por %p51, %p52
      %p54 = scmp.ne.s32.totalorder %s45, %s46
      %p55 = scmp.eq.s32.totalorder %s14, 0
      %p56 = por %p54, %p55
      %p57 = scmp.ne.s32.totalorder %s45, %s46
      %p58 = scmp.eq.s32.totalorder %s15, 3
      %p59 = por %p57, %p58
      %p61 = scmp.ne.s32.totalorder %s46, %s60
      %p62 = scmp.eq.s32.totalorder %s15, 0
      %p63 = por %p61, %p62
      %s64 = ssub.s32 %s9, %s16
      %p65 = scmp.eq.s32.totalorder %s64, 0
      %s67 = sadd.s32 %s66, 1
      %s68 = scalar_select %p65, %s66, %s67
      %p71 = pneg %p65
      %p72 = scmp.eq.s32.totalorder %s9, 3
      %p73 = por %p71, %p72
      %p74 = scmp.ne.s32.totalorder %s66, %s69
      %p75 = scmp.eq.s32.totalorder %s9, 0
      %p76 = por %p74, %p75
      %p77 = scmp.ne.s32.totalorder %s66, %s69
      %p78 = scmp.eq.s32.totalorder %s14, 3
      %p79 = por %p77, %p78
      %p80 = scmp.ne.s32.totalorder %s69, %s70
      %p81 = scmp.eq.s32.totalorder %s14, 0
      %p82 = por %p80, %p81
      %p83 = scmp.ne.s32.totalorder %s69, %s70
      %p84 = scmp.eq.s32.totalorder %s15, 3
      %p85 = por %p83, %p84
      %p87 = scmp.ne.s32.totalorder %s70, %s86
      %p88 = scmp.eq.s32.totalorder %s15, 0
      %p89 = por %p87, %p88
      %p90 = scmp.le.s32.totalorder 1, %s9
      %p91 = scmp.lt.s32.totalorder %s9, 5
      %p92 = pnand %p90, %p91
      %p93 = pneg %p92
      // Predicated region
      $region9: #{_forward.1} parent=5 // pred_check
        _
      $region10: #{_forward.1} parent=5 // pred_check_branch
        %95 = sbr.rel (%p92) target = $region12
      $region11: #{_forward.1} parent=5 // pred_region
        %s96 = ssub.s32 %s9, 1
        // Predicated region
        $region13: #{_forward.1} parent=11 // pred_check
          %p97 = pneg %p56
        $region14: #{_forward.1} parent=11 // pred_check_branch
          %99 = sbr.rel (%p97) target = $region16
        $region15: #{_forward.1} parent=11 // pred_region
          %s101 = ssub.s32 4480, 4480
          %102 = vsyncadd [#allocation5], %s101
          %s103 = sshll.u32 [#allocation4], 4
          %s104 = int_to_ptr.vmem [resolvable:$true] %s103
          %109 = dma.hbm_to_vmem [thread:$0]  %s1, 4480, %s104, [#allocation5], 128, 128, 8
        $region16: #{_forward.1} parent=11 // pred_fallthru
          _
      $region12: #{_forward.1} parent=5 // pred_fallthru
        _
      %p110 = scmp.lt.s32.totalorder %s9, 4
      // Predicated region
      $region17: #{_forward.1} parent=5 // pred_check
        %p111 = pneg %p110
      $region18: #{_forward.1} parent=5 // pred_check_branch
        %113 = sbr.rel (%p111) target = $region20
      $region19: #{_forward.1} parent=5 // pred_region
        // Predicated region
        $region21: #{_forward.1} parent=19 // pred_check
          %p114 = pneg %p29
        $region22: #{_forward.1} parent=19 // pred_check_branch
          %116 = sbr.rel (%p114) target = $region24
        $region23: #{_forward.1} parent=19 // pred_region
          %p117 = scmp.lt.s32.totalorder %s9, 3
          %s118 = scalar_select %p117, %s9, 3
          %s119 = smul.addr %s118, 8
          %s120 = scalar_lea.vmem %s0, %s119
        $region24: #{_forward.1} parent=19 // pred_fallthru
          _
      $region20: #{_forward.1} parent=5 // pred_fallthru
        _
      %p121 = scmp.le.s32.totalorder 1, %s9
      %p122 = scmp.lt.s32.totalorder %s9, 5
      %p123 = pnand %p121, %p122
      %p124 = pneg %p123
      // Predicated region
      $region25: #{_forward.1} parent=5 // pred_check
        _
      $region26: #{_forward.1} parent=5 // pred_check_branch
        %126 = sbr.rel (%p123) target = $region28
      $region27: #{_forward.1} parent=5 // pred_region
        %s127 = ssub.s32 %s9, 1
        // Predicated region
        $region29: #{_forward.1} parent=27 // pred_check
          %p128 = pneg %p56
        $region30: #{_forward.1} parent=27 // pred_check_branch
          %130 = sbr.rel (%p128) target = $region32
        $region31: #{_forward.1} parent=27 // pred_region
          %131 = dma.done [#allocation5], 4480
        $region32: #{_forward.1} parent=27 // pred_fallthru
          _
        %p132 = scmp.lt.s32.totalorder %s14, 3
        %s133 = scalar_select %p132, %s14, 3
        %s134 = smul.addr %s133, 8
        %s135 = scalar_lea.vmem %s0, %s134
        %p136 = pneg %p35
        %p137 = pneg %p32
        %p138 = pneg %p56
        %p139 = pneg %p53
        %p140 = pneg %p82
        %p141 = pneg %p79
        %p142 = scmp.lt.s32.totalorder %s14, 3
        %s143 = scalar_select %p142, %s14, 3
        %s144 = scalar_lea.vmem %s2, %s143
        %p145 = scmp.lt.s32.totalorder %s14, 3
        %s146 = scalar_select %p145, %s14, 3
        %s147 = smul.addr %s146, 8
        %s148 = scalar_lea.vmem %s0, %s147
        %p149 = scmp.lt.s32.totalorder %s14, 3
        %s150 = scalar_select %p149, %s14, 3
        %s151 = scalar_lea.vmem %s2, %s150
        %v152 = vld [vmem:[#allocation4] sm:$0xff]
        %v153 = vld [vmem:[#allocation4 + $0x8] sm:$0xff]
        %v154 = vld [vmem:[#allocation4 + $0x10] sm:$0xff]
        %v155 = vld [vmem:[#allocation4 + $0x18] sm:$0xff]
        %v156 = vld [vmem:[#allocation4 + $0x20] sm:$0xff]
        %v157 = vld [vmem:[#allocation4 + $0x28] sm:$0xff]
        %v158 = vld [vmem:[#allocation4 + $0x30] sm:$0xff]
        %v159 = vld [vmem:[#allocation4 + $0x38] sm:$0xff]
        %v160 = vld [vmem:[#allocation4 + $0x40] sm:$0xff]
        %v161 = vld [vmem:[#allocation4 + $0x48] sm:$0xff]
        %v162 = vld [vmem:[#allocation4 + $0x50] sm:$0xff]
        %v163 = vld [vmem:[#allocation4 + $0x58] sm:$0xff]
        %v164 = vld [vmem:[#allocation4 + $0x60] sm:$0xf]
        %v165 = vld [vmem:[#allocation4 + $0x68] sm:$0xff]
        %v166 = vld [vmem:[#allocation4 + $0x70] sm:$0xff]
        %v167 = vld [vmem:[#allocation4 + $0x78] sm:$0xf]
        %v168 = vld [vmem:[#allocation4 + $0x80] sm:$0x1]
        %v169 = vld [vmem:[#allocation4 + $0x88] sm:$0x1]
        %v170 = vld [vmem:[#allocation4 + $0x90] sm:$0xff]
        %v171 = vld [vmem:[#allocation4 + $0x98] sm:$0xff]
        %v172 = vld [vmem:[#allocation4 + $0xa0] sm:$0xf]
        %v173 = vld [vmem:[#allocation4 + $0xa8] sm:$0xff]
        %v174 = vld [vmem:[#allocation4 + $0xb0] sm:$0xff]
        %v175 = vld [vmem:[#allocation4 + $0xb8] sm:$0xf]
        %v176 = vld [vmem:[#allocation4 + $0xc0] sm:$0x1]
        %v177 = vld [vmem:[#allocation4 + $0xc8] sm:$0xff]
        %v178 = vld [vmem:[#allocation4 + $0xd0] sm:$0xff]
        %v179 = vld [vmem:[#allocation4 + $0xd8] sm:$0x1]
        %v180 = vld [vmem:[#allocation4 + $0xe0] sm:$0xff]
        %v181 = vld [vmem:[#allocation4 + $0xe8] sm:$0xff]
        %v182 = vld [vmem:[#allocation4 + $0xf0] sm:$0x1]
        %v183 = vld [vmem:[#allocation4 + $0xf8] sm:$0xff]
        %v184 = vld [vmem:[#allocation4 + $0x100] sm:$0xff]
        %v185 = vld [vmem:[#allocation4 + $0x108] sm:$0x1]
        %v186 = vld [vmem:[%s148] sm:$0xff]
        %v187 = vlaneseq
        %v188 = vand.u32 %v187, 127
        %vm189 = vcmp.lt.s32.totalorder %v188, 50
        %v190 = vadd.s32 %v186, 50
        %191 = vset.pattern.permute.xlu0 0
        %192 = vperm.xlu0 %191, %v186
        %v193 = vpop.permute.xlu0 %192
        %194 = vset.pattern.permute.xlu0 1
        %195 = vperm.xlu0 %194, %v190
        %v196 = vpop.permute.xlu0 %195
        %v197 = vsel %vm189, %v193, %v196
        %vm198 = vcmp.eq.s32.totalorder %v188, %v197
        %v199 = vsel %vm198, 1, 0
        %v200 = vcvt.s32.f32 %v199
        %vm201 = vcmask 818176
        %v203 = vsel %vm201, %v200, 0
        %vm205 = vcmask 1043456
        %v207 = vsel %vm205, %v164, 0
        %209 = vmatprep.subr.mxu0 0.0
        %210 = vmatpush1.msra.mxu0 %v152
        %211 = vmatprep.subr.mxu0 0.0
        %212 = vmatpush1.msra.mxu0 %v153
        %213 = vmatprep.subr.mxu0 0.0
        %214 = vmatpush1.msra.mxu0 %v154
        %215 = vmatprep.subr.mxu0 0.0
        %216 = vmatpush1.msra.mxu0 %v155
        %217 = vmatprep.subr.mxu0 0.0
        %218 = vmatpush1.msra.mxu0 %v156
        %219 = vmatprep.subr.mxu0 0.0
        %220 = vmatpush1.msra.mxu0 %v157
        %221 = vmatprep.subr.mxu0 0.0
        %222 = vmatpush1.msra.mxu0 %v158
        %223 = vmatprep.subr.mxu0 0.0
        %224 = vmatpush1.msra.mxu0 %v159
        %225 = vmatprep.subr.mxu0 0.0
        %226 = vmatpush1.msra.mxu0 %v160
        %227 = vmatprep.subr.mxu0 0.0
        %228 = vmatpush1.msra.mxu0 %v161
        %229 = vmatprep.subr.mxu0 0.0
        %230 = vmatpush1.msra.mxu0 %v162
        %231 = vmatprep.subr.mxu0 0.0
        %232 = vmatpush1.msra.mxu0 %v163
        %233 = vmatprep.subr.mxu0 0.0
        %234 = vmatpush1.msra.mxu0 %v207
        %235 = vmatprep.subr.mxu0 0.0
        %236 = vmatpush1.msra.mxu0 0.0
        %237 = vmatprep.subr.mxu0 0.0
        %238 = vmatpush1.msra.mxu0 0.0
        %239 = vmatprep.subr.mxu0 0.0
        %240 = vmatpush1.msra.mxu0 0.0
        %241 = vmatprep.subr.mxu0 0.0
        %242 = vmatpush1.msra.mxu0 0.0
        %243 = vmatprep.subr.mxu0 0.0
        %244 = vmatpush1.msra.mxu0 0.0
        %245 = vmatprep.subr.mxu0 0.0
        %246 = vmatpush1.msra.mxu0 0.0
        %247 = vmatprep.subr.mxu0 0.0
        %248 = vmatpush1.msra.mxu0 0.0
        %249 = vmatprep.subr.mxu0 0.0
        %250 = vmatpush1.msra.mxu0 0.0
        %251 = vmatprep.subr.mxu0 0.0
        %252 = vmatpush1.msra.mxu0 0.0
        %253 = vmatprep.subr.mxu0 0.0
        %254 = vmatpush1.msra.mxu0 0.0
        %255 = vmatprep.subr.mxu0 0.0
        %256 = vmatpush1.msra.mxu0 0.0
        %257 = vmatprep.subr.mxu0 0.0
        %258 = vmatpush1.msra.mxu0 0.0
        %259 = vmatprep.subr.mxu0 0.0
        %260 = vmatpush1.msra.mxu0 0.0
        %261 = vmatprep.subr.mxu0 0.0
        %262 = vmatpush1.msra.mxu0 0.0
        %263 = vmatprep.subr.mxu0 0.0
        %264 = vmatpush1.msra.mxu0 0.0
        %265 = vmatprep.subr.mxu0 0.0
        %266 = vmatpush1.msra.mxu0 0.0
        %267 = vmatprep.subr.mxu0 0.0
        %268 = vmatpush1.msra.mxu0 0.0
        %269 = vmatprep.subr.mxu0 0.0
        %270 = vmatpush1.msra.mxu0 0.0
        %271 = vmatprep.subr.mxu0 0.0
        %272 = vmatpush1.msra.mxu0 0.0
        %273 = vmatprep.mubr.f32.mxu0 0.0
        %274 = vmatmul.mubr.f32.gmra.mrb[0].mxu0 %v203
        %v275 = vpop.f32.mrb[0].mxu0
        %v276 = vadd.f32 0.0, %v275
        %v277 = vpop.f32.mrb[0].mxu0
        %278 = vdwg.mxu0
        %vm279 = vcmask 162816
        %v281 = vsel %vm279, %v168, 0
        %v284 = vsel %vm205, %v167, 0
        %286 = vmatprep.subr.mxu0 0.0
        %287 = vmatpush1.msra.mxu0 %v165
        %288 = vmatprep.subr.mxu0 0.0
        %289 = vmatpush1.msra.mxu0 %v166
        %290 = vmatprep.subr.mxu0 0.0
        %291 = vmatpush1.msra.mxu0 %v284
        %292 = vmatprep.subr.mxu0 0.0
        %293 = vmatpush1.msra.mxu0 0.0
        %294 = vmatprep.subr.mxu0 0.0
        %295 = vmatpush1.msra.mxu0 0.0
        %296 = vmatprep.subr.mxu0 0.0
        %297 = vmatpush1.msra.mxu0 0.0
        %298 = vmatprep.subr.mxu0 0.0
        %299 = vmatpush1.msra.mxu0 0.0
        %300 = vmatprep.subr.mxu0 0.0
        %301 = vmatpush1.msra.mxu0 0.0
        %302 = vmatprep.subr.mxu0 0.0
        %303 = vmatpush1.msra.mxu0 0.0
        %304 = vmatprep.subr.mxu0 0.0
        %305 = vmatpush1.msra.mxu0 0.0
        %306 = vmatprep.subr.mxu0 0.0
        %307 = vmatpush1.msra.mxu0 0.0
        %308 = vmatprep.subr.mxu0 0.0
        %309 = vmatpush1.msra.mxu0 0.0
        %310 = vmatprep.subr.mxu0 0.0
        %311 = vmatpush1.msra.mxu0 0.0
        %312 = vmatprep.subr.mxu0 0.0
        %313 = vmatpush1.msra.mxu0 0.0
        %314 = vmatprep.subr.mxu0 0.0
        %315 = vmatpush1.msra.mxu0 0.0
        %316 = vmatprep.subr.mxu0 0.0
        %317 = vmatpush1.msra.mxu0 0.0
        %318 = vmatprep.subr.mxu0 0.0
        %319 = vmatpush1.msra.mxu0 0.0
        %320 = vmatprep.subr.mxu0 0.0
        %321 = vmatpush1.msra.mxu0 0.0
        %322 = vmatprep.subr.mxu0 0.0
        %323 = vmatpush1.msra.mxu0 0.0
        %324 = vmatprep.subr.mxu0 0.0
        %325 = vmatpush1.msra.mxu0 0.0
        %326 = vmatprep.subr.mxu0 0.0
        %327 = vmatpush1.msra.mxu0 0.0
        %328 = vmatprep.subr.mxu0 0.0
        %329 = vmatpush1.msra.mxu0 0.0
        %330 = vmatprep.subr.mxu0 0.0
        %331 = vmatpush1.msra.mxu0 0.0
        %332 = vmatprep.subr.mxu0 0.0
        %333 = vmatpush1.msra.mxu0 0.0
        %334 = vmatprep.subr.mxu0 0.0
        %335 = vmatpush1.msra.mxu0 0.0
        %336 = vmatprep.subr.mxu0 0.0
        %337 = vmatpush1.msra.mxu0 0.0
        %338 = vmatprep.subr.mxu0 0.0
        %339 = vmatpush1.msra.mxu0 0.0
        %340 = vmatprep.subr.mxu0 0.0
        %341 = vmatpush1.msra.mxu0 0.0
        %342 = vmatprep.subr.mxu0 0.0
        %343 = vmatpush1.msra.mxu0 0.0
        %344 = vmatprep.subr.mxu0 0.0
        %345 = vmatpush1.msra.mxu0 0.0
        %346 = vmatprep.subr.mxu0 0.0
        %347 = vmatpush1.msra.mxu0 0.0
        %348 = vmatprep.subr.mxu0 0.0
        %349 = vmatpush1.msra.mxu0 0.0
        %350 = vmatprep.mubr.f32.mxu0 0.0
        %351 = vmatmul.mubr.f32.gmra.mrb[0].mxu0 %v281
        %v352 = vpop.f32.mrb[0].mxu0
        %v353 = vadd.f32 0.0, %v352
        %v354 = vpop.f32.mrb[0].mxu0
        %355 = vdwg.mxu0
        %v356 = vadd.f32 %v276, %v353
        %v357 = vmul.f32 %v356, 0.5
        %v358 = vtanh.pop %v357
        %v359 = vmul.f32 %v358, 0.5
        %v360 = vadd.f32 %v359, 0.5
        %v361 = vtanh.pop %v356
        %363 = vrot.lane.b32.xlu0 %v169, 20
        %v364 = vpop.permute.xlu0 %363
        %v366 = vmul.f32 %v360, %v364
        %368 = vrot.lane.b32.xlu0 %v361, 68
        %v369 = vpop.permute.xlu0 %368
        %v371 = vmul.f32 %v360, %v369
        %373 = vrot.lane.b32.xlu0 %v371, 20
        %v374 = vpop.permute.xlu0 %373
        %v376 = vadd.f32 %v366, %v374
        %v377 = vtanh.pop %v376
        %379 = vrot.lane.b32.xlu0 %v377, 20
        %v380 = vpop.permute.xlu0 %379
        %v382 = vmul.f32 %v360, %v380
        %384 = vrot.lane.b32.xlu0 %v382, 88
        %v385 = vpop.permute.xlu0 %384
        %vm387 = vcmask 155648
        %388 = vst.msk [vmem:[#allocation2] sm:$0x1] %vm387, %v385
        %389 = vst.msk [vmem:[#allocation3 + $0x7] sm:$0x1] %vm387, %v385
        %v390 = vsel %vm279, %v385, 0
        %392 = vmatprep.subr.mxu0 0.0
        %393 = vmatpush1.msra.mxu0 %v165
        %394 = vmatprep.subr.mxu0 0.0
        %395 = vmatpush1.msra.mxu0 %v166
        %396 = vmatprep.subr.mxu0 0.0
        %397 = vmatpush1.msra.mxu0 %v284
        %398 = vmatprep.subr.mxu0 0.0
        %399 = vmatpush1.msra.mxu0 0.0
        %400 = vmatprep.subr.mxu0 0.0
        %401 = vmatpush1.msra.mxu0 0.0
        %402 = vmatprep.subr.mxu0 0.0
        %403 = vmatpush1.msra.mxu0 0.0
        %404 = vmatprep.subr.mxu0 0.0
        %405 = vmatpush1.msra.mxu0 0.0
        %406 = vmatprep.subr.mxu0 0.0
        %407 = vmatpush1.msra.mxu0 0.0
        %408 = vmatprep.subr.mxu0 0.0
        %409 = vmatpush1.msra.mxu0 0.0
        %410 = vmatprep.subr.mxu0 0.0
        %411 = vmatpush1.msra.mxu0 0.0
        %412 = vmatprep.subr.mxu0 0.0
        %413 = vmatpush1.msra.mxu0 0.0
        %414 = vmatprep.subr.mxu0 0.0
        %415 = vmatpush1.msra.mxu0 0.0
        %416 = vmatprep.subr.mxu0 0.0
        %417 = vmatpush1.msra.mxu0 0.0
        %418 = vmatprep.subr.mxu0 0.0
        %419 = vmatpush1.msra.mxu0 0.0
        %420 = vmatprep.subr.mxu0 0.0
        %421 = vmatpush1.msra.mxu0 0.0
        %422 = vmatprep.subr.mxu0 0.0
        %423 = vmatpush1.msra.mxu0 0.0
        %424 = vmatprep.subr.mxu0 0.0
        %425 = vmatpush1.msra.mxu0 0.0
        %426 = vmatprep.subr.mxu0 0.0
        %427 = vmatpush1.msra.mxu0 0.0
        %428 = vmatprep.subr.mxu0 0.0
        %429 = vmatpush1.msra.mxu0 0.0
        %430 = vmatprep.subr.mxu0 0.0
        %431 = vmatpush1.msra.mxu0 0.0
        %432 = vmatprep.subr.mxu0 0.0
        %433 = vmatpush1.msra.mxu0 0.0
        %434 = vmatprep.subr.mxu0 0.0
        %435 = vmatpush1.msra.mxu0 0.0
        %436 = vmatprep.subr.mxu0 0.0
        %437 = vmatpush1.msra.mxu0 0.0
        %438 = vmatprep.subr.mxu0 0.0
        %439 = vmatpush1.msra.mxu0 0.0
        %440 = vmatprep.subr.mxu0 0.0
        %441 = vmatpush1.msra.mxu0 0.0
        %442 = vmatprep.subr.mxu0 0.0
        %443 = vmatpush1.msra.mxu0 0.0
        %444 = vmatprep.subr.mxu0 0.0
        %445 = vmatpush1.msra.mxu0 0.0
        %446 = vmatprep.subr.mxu0 0.0
        %447 = vmatpush1.msra.mxu0 0.0
        %448 = vmatprep.subr.mxu0 0.0
        %449 = vmatpush1.msra.mxu0 0.0
        %450 = vmatprep.subr.mxu0 0.0
        %451 = vmatpush1.msra.mxu0 0.0
        %452 = vmatprep.subr.mxu0 0.0
        %453 = vmatpush1.msra.mxu0 0.0
        %454 = vmatprep.subr.mxu0 0.0
        %455 = vmatpush1.msra.mxu0 0.0
        %456 = vmatprep.mubr.f32.mxu0 0.0
        %457 = vmatmul.mubr.f32.gmra.mrb[0].mxu0 %v390
        %v458 = vpop.f32.mrb[0].mxu0
        %v459 = vadd.f32 0.0, %v458
        %v460 = vpop.f32.mrb[0].mxu0
        %461 = vdwg.mxu0
        %v463 = vrot.slane %v459, 7
        %v465 = vadd.f32 %v276, %v463
        %v466 = vmul.f32 %v465, 0.5
        %v467 = vtanh.pop %v466
        %v468 = vmul.f32 %v467, 0.5
        %v469 = vadd.f32 %v468, 0.5
        %v470 = vtanh.pop %v465
        %v472 = vrot.slane %v376, 7
        %v474 = vmul.f32 %v469, %v472
        %476 = vrot.lane.b32.xlu0 %v470, 68
        %v477 = vpop.permute.xlu0 %476
        %v479 = vmul.f32 %v469, %v477
        %481 = vrot.lane.b32.xlu0 %v479, 20
        %v482 = vpop.permute.xlu0 %481
        %v484 = vadd.f32 %v474, %v482
        %v485 = vtanh.pop %v484
        %487 = vrot.lane.b32.xlu0 %v485, 20
        %v488 = vpop.permute.xlu0 %487
        %v490 = vmul.f32 %v469, %v488
        %492 = vrot.lane.b32.xlu0 %v490, 88
        %v493 = vpop.permute.xlu0 %492
        %vm495 = vcmask 156673
        %496 = vst.msk [vmem:[#allocation2] sm:$0x2] %vm495, %v493
        %497 = vst.msk [vmem:[#allocation3 + $0x5] sm:$0x2] %vm495, %v493
        %v498 = vrot.slane %v490, 1
        %499 = vrot.lane.b32.xlu0 %v498, 88
        %v500 = vpop.permute.xlu0 %499
        %v501 = vsel %vm279, %v500, 0
        %503 = vmatprep.subr.mxu0 0.0
        %504 = vmatpush1.msra.mxu0 %v165
        %505 = vmatprep.subr.mxu0 0.0
        %506 = vmatpush1.msra.mxu0 %v166
        %507 = vmatprep.subr.mxu0 0.0
        %508 = vmatpush1.msra.mxu0 %v284
        %509 = vmatprep.subr.mxu0 0.0
        %510 = vmatpush1.msra.mxu0 0.0
        %511 = vmatprep.subr.mxu0 0.0
        %512 = vmatpush1.msra.mxu0 0.0
        %513 = vmatprep.subr.mxu0 0.0
        %514 = vmatpush1.msra.mxu0 0.0
        %515 = vmatprep.subr.mxu0 0.0
        %516 = vmatpush1.msra.mxu0 0.0
        %517 = vmatprep.subr.mxu0 0.0
        %518 = vmatpush1.msra.mxu0 0.0
        %519 = vmatprep.subr.mxu0 0.0
        %520 = vmatpush1.msra.mxu0 0.0
        %521 = vmatprep.subr.mxu0 0.0
        %522 = vmatpush1.msra.mxu0 0.0
        %523 = vmatprep.subr.mxu0 0.0
        %524 = vmatpush1.msra.mxu0 0.0
        %525 = vmatprep.subr.mxu0 0.0
        %526 = vmatpush1.msra.mxu0 0.0
        %527 = vmatprep.subr.mxu0 0.0
        %528 = vmatpush1.msra.mxu0 0.0
        %529 = vmatprep.subr.mxu0 0.0
        %530 = vmatpush1.msra.mxu0 0.0
        %531 = vmatprep.subr.mxu0 0.0
        %532 = vmatpush1.msra.mxu0 0.0
        %533 = vmatprep.subr.mxu0 0.0
        %534 = vmatpush1.msra.mxu0 0.0
        %535 = vmatprep.subr.mxu0 0.0
        %536 = vmatpush1.msra.mxu0 0.0
        %537 = vmatprep.subr.mxu0 0.0
        %538 = vmatpush1.msra.mxu0 0.0
        %539 = vmatprep.subr.mxu0 0.0
        %540 = vmatpush1.msra.mxu0 0.0
        %541 = vmatprep.subr.mxu0 0.0
        %542 = vmatpush1.msra.mxu0 0.0
        %543 = vmatprep.subr.mxu0 0.0
        %544 = vmatpush1.msra.mxu0 0.0
        %545 = vmatprep.subr.mxu0 0.0
        %546 = vmatpush1.msra.mxu0 0.0
        %547 = vmatprep.subr.mxu0 0.0
        %548 = vmatpush1.msra.mxu0 0.0
        %549 = vmatprep.subr.mxu0 0.0
        %550 = vmatpush1.msra.mxu0 0.0
        %551 = vmatprep.subr.mxu0 0.0
        %552 = vmatpush1.msra.mxu0 0.0
        %553 = vmatprep.subr.mxu0 0.0
        %554 = vmatpush1.msra.mxu0 0.0
        %555 = vmatprep.subr.mxu0 0.0
        %556 = vmatpush1.msra.mxu0 0.0
        %557 = vmatprep.subr.mxu0 0.0
        %558 = vmatpush1.msra.mxu0 0.0
        %559 = vmatprep.subr.mxu0 0.0
        %560 = vmatpush1.msra.mxu0 0.0
        %561 = vmatprep.subr.mxu0 0.0
        %562 = vmatpush1.msra.mxu0 0.0
        %563 = vmatprep.subr.mxu0 0.0
        %564 = vmatpush1.msra.mxu0 0.0
        %565 = vmatprep.subr.mxu0 0.0
        %566 = vmatpush1.msra.mxu0 0.0
        %567 = vmatprep.mubr.f32.mxu0 0.0
        %568 = vmatmul.mubr.f32.gmra.mrb[0].mxu0 %v501
        %v569 = vpop.f32.mrb[0].mxu0
        %v570 = vadd.f32 0.0, %v569
        %v571 = vpop.f32.mrb[0].mxu0
        %572 = vdwg.mxu0
        %v574 = vrot.slane %v570, 6
        %v576 = vadd.f32 %v276, %v574
        %v577 = vmul.f32 %v576, 0.5
        %v578 = vtanh.pop %v577
        %v579 = vmul.f32 %v578, 0.5
        %v580 = vadd.f32 %v579, 0.5
        %v581 = vtanh.pop %v576
        %v583 = vrot.slane %v484, 7
        %v585 = vmul.f32 %v580, %v583
        %587 = vrot.lane.b32.xlu0 %v581, 68
        %v588 = vpop.permute.xlu0 %587
        %v590 = vmul.f32 %v580, %v588
        %592 = vrot.lane.b32.xlu0 %v590, 20
        %v593 = vpop.permute.xlu0 %592
        %v595 = vadd.f32 %v585, %v593
        %v596 = vtanh.pop %v595
        %598 = vrot.lane.b32.xlu0 %v596, 20
        %v599 = vpop.permute.xlu0 %598
        %v601 = vmul.f32 %v580, %v599
        %603 = vrot.lane.b32.xlu0 %v601, 88
        %v604 = vpop.permute.xlu0 %603
        %vm606 = vcmask 157698
        %607 = vst.msk [vmem:[#allocation2] sm:$0x4] %vm606, %v604
        %608 = vst.msk [vmem:[#allocation3 + $0x3] sm:$0x4] %vm606, %v604
        %v609 = vrot.slane %v601, 2
        %610 = vrot.lane.b32.xlu0 %v609, 88
        %v611 = vpop.permute.xlu0 %610
        %v612 = vsel %vm279, %v611, 0
        %614 = vmatprep.subr.mxu0 0.0
        %615 = vmatpush1.msra.mxu0 %v165
        %616 = vmatprep.subr.mxu0 0.0
        %617 = vmatpush1.msra.mxu0 %v166
        %618 = vmatprep.subr.mxu0 0.0
        %619 = vmatpush1.msra.mxu0 %v284
        %620 = vmatprep.subr.mxu0 0.0
        %621 = vmatpush1.msra.mxu0 0.0
        %622 = vmatprep.subr.mxu0 0.0
        %623 = vmatpush1.msra.mxu0 0.0
        %624 = vmatprep.subr.mxu0 0.0
        %625 = vmatpush1.msra.mxu0 0.0
        %626 = vmatprep.subr.mxu0 0.0
        %627 = vmatpush1.msra.mxu0 0.0
        %628 = vmatprep.subr.mxu0 0.0
        %629 = vmatpush1.msra.mxu0 0.0
        %630 = vmatprep.subr.mxu0 0.0
        %631 = vmatpush1.msra.mxu0 0.0
        %632 = vmatprep.subr.mxu0 0.0
        %633 = vmatpush1.msra.mxu0 0.0
        %634 = vmatprep.subr.mxu0 0.0
        %635 = vmatpush1.msra.mxu0 0.0
        %636 = vmatprep.subr.mxu0 0.0
        %637 = vmatpush1.msra.mxu0 0.0
        %638 = vmatprep.subr.mxu0 0.0
        %639 = vmatpush1.msra.mxu0 0.0
        %640 = vmatprep.subr.mxu0 0.0
        %641 = vmatpush1.msra.mxu0 0.0
        %642 = vmatprep.subr.mxu0 0.0
        %643 = vmatpush1.msra.mxu0 0.0
        %644 = vmatprep.subr.mxu0 0.0
        %645 = vmatpush1.msra.mxu0 0.0
        %646 = vmatprep.subr.mxu0 0.0
        %647 = vmatpush1.msra.mxu0 0.0
        %648 = vmatprep.subr.mxu0 0.0
        %649 = vmatpush1.msra.mxu0 0.0
        %650 = vmatprep.subr.mxu0 0.0
        %651 = vmatpush1.msra.mxu0 0.0
        %652 = vmatprep.subr.mxu0 0.0
        %653 = vmatpush1.msra.mxu0 0.0
        %654 = vmatprep.subr.mxu0 0.0
        %655 = vmatpush1.msra.mxu0 0.0
        %656 = vmatprep.subr.mxu0 0.0
        %657 = vmatpush1.msra.mxu0 0.0
        %658 = vmatprep.subr.mxu0 0.0
        %659 = vmatpush1.msra.mxu0 0.0
        %660 = vmatprep.subr.mxu0 0.0
        %661 = vmatpush1.msra.mxu0 0.0
        %662 = vmatprep.subr.mxu0 0.0
        %663 = vmatpush1.msra.mxu0 0.0
        %664 = vmatprep.subr.mxu0 0.0
        %665 = vmatpush1.msra.mxu0 0.0
        %666 = vmatprep.subr.mxu0 0.0
        %667 = vmatpush1.msra.mxu0 0.0
        %668 = vmatprep.subr.mxu0 0.0
        %669 = vmatpush1.msra.mxu0 0.0
        %670 = vmatprep.subr.mxu0 0.0
        %671 = vmatpush1.msra.mxu0 0.0
        %672 = vmatprep.subr.mxu0 0.0
        %673 = vmatpush1.msra.mxu0 0.0
        %674 = vmatprep.subr.mxu0 0.0
        %675 = vmatpush1.msra.mxu0 0.0
        %676 = vmatprep.subr.mxu0 0.0
        %677 = vmatpush1.msra.mxu0 0.0
        %678 = vmatprep.mubr.f32.mxu0 0.0
        %679 = vmatmul.mubr.f32.gmra.mrb[0].mxu0 %v612
        %v680 = vpop.f32.mrb[0].mxu0
        %v681 = vadd.f32 0.0, %v680
        %v682 = vpop.f32.mrb[0].mxu0
        %683 = vdwg.mxu0
        %v685 = vrot.slane %v681, 5
        %v687 = vadd.f32 %v276, %v685
        %v688 = vmul.f32 %v687, 0.5
        %v689 = vtanh.pop %v688
        %v690 = vmul.f32 %v689, 0.5
        %v691 = vadd.f32 %v690, 0.5
        %v692 = vtanh.pop %v687
        %v694 = vrot.slane %v595, 7
        %v696 = vmul.f32 %v691, %v694
        %698 = vrot.lane.b32.xlu0 %v692, 68
        %v699 = vpop.permute.xlu0 %698
        %v701 = vmul.f32 %v691, %v699
        %703 = vrot.lane.b32.xlu0 %v701, 20
        %v704 = vpop.permute.xlu0 %703
        %v706 = vadd.f32 %v696, %v704
        %v707 = vtanh.pop %v706
        %709 = vrot.lane.b32.xlu0 %v707, 20
        %v710 = vpop.permute.xlu0 %709
        %v712 = vmul.f32 %v691, %v710
        %714 = vrot.lane.b32.xlu0 %v712, 88
        %v715 = vpop.permute.xlu0 %714
        %vm717 = vcmask 158723
        %718 = vst.msk [vmem:[#allocation2] sm:$0x8] %vm717, %v715
        %719 = vst.msk [vmem:[#allocation3 + $0x1] sm:$0x8] %vm717, %v715
        %v720 = vrot.slane %v712, 3
        %721 = vrot.lane.b32.xlu0 %v720, 88
        %v722 = vpop.permute.xlu0 %721
        %v723 = vsel %vm279, %v722, 0
        %725 = vmatprep.subr.mxu0 0.0
        %726 = vmatpush1.msra.mxu0 %v165
        %727 = vmatprep.subr.mxu0 0.0
        %728 = vmatpush1.msra.mxu0 %v166
        %729 = vmatprep.subr.mxu0 0.0
        %730 = vmatpush1.msra.mxu0 %v284
        %731 = vmatprep.subr.mxu0 0.0
        %732 = vmatpush1.msra.mxu0 0.0
        %733 = vmatprep.subr.mxu0 0.0
        %734 = vmatpush1.msra.mxu0 0.0
        %735 = vmatprep.subr.mxu0 0.0
        %736 = vmatpush1.msra.mxu0 0.0
        %737 = vmatprep.subr.mxu0 0.0
        %738 = vmatpush1.msra.mxu0 0.0
        %739 = vmatprep.subr.mxu0 0.0
        %740 = vmatpush1.msra.mxu0 0.0
        %741 = vmatprep.subr.mxu0 0.0
        %742 = vmatpush1.msra.mxu0 0.0
        %743 = vmatprep.subr.mxu0 0.0
        %744 = vmatpush1.msra.mxu0 0.0
        %745 = vmatprep.subr.mxu0 0.0
        %746 = vmatpush1.msra.mxu0 0.0
        %747 = vmatprep.subr.mxu0 0.0
        %748 = vmatpush1.msra.mxu0 0.0
        %749 = vmatprep.subr.mxu0 0.0
        %750 = vmatpush1.msra.mxu0 0.0
        %751 = vmatprep.subr.mxu0 0.0
        %752 = vmatpush1.msra.mxu0 0.0
        %753 = vmatprep.subr.mxu0 0.0
        %754 = vmatpush1.msra.mxu0 0.0
        %755 = vmatprep.subr.mxu0 0.0
        %756 = vmatpush1.msra.mxu0 0.0
        %757 = vmatprep.subr.mxu0 0.0
        %758 = vmatpush1.msra.mxu0 0.0
        %759 = vmatprep.subr.mxu0 0.0
        %760 = vmatpush1.msra.mxu0 0.0
        %761 = vmatprep.subr.mxu0 0.0
        %762 = vmatpush1.msra.mxu0 0.0
        %763 = vmatprep.subr.mxu0 0.0
        %764 = vmatpush1.msra.mxu0 0.0
        %765 = vmatprep.subr.mxu0 0.0
        %766 = vmatpush1.msra.mxu0 0.0
        %767 = vmatprep.subr.mxu0 0.0
        %768 = vmatpush1.msra.mxu0 0.0
        %769 = vmatprep.subr.mxu0 0.0
        %770 = vmatpush1.msra.mxu0 0.0
        %771 = vmatprep.subr.mxu0 0.0
        %772 = vmatpush1.msra.mxu0 0.0
        %773 = vmatprep.subr.mxu0 0.0
        %774 = vmatpush1.msra.mxu0 0.0
        %775 = vmatprep.subr.mxu0 0.0
        %776 = vmatpush1.msra.mxu0 0.0
        %777 = vmatprep.subr.mxu0 0.0
        %778 = vmatpush1.msra.mxu0 0.0
        %779 = vmatprep.subr.mxu0 0.0
        %780 = vmatpush1.msra.mxu0 0.0
        %781 = vmatprep.subr.mxu0 0.0
        %782 = vmatpush1.msra.mxu0 0.0
        %783 = vmatprep.subr.mxu0 0.0
        %784 = vmatpush1.msra.mxu0 0.0
        %785 = vmatprep.subr.mxu0 0.0
        %786 = vmatpush1.msra.mxu0 0.0
        %787 = vmatprep.subr.mxu0 0.0
        %788 = vmatpush1.msra.mxu0 0.0
        %789 = vmatprep.mubr.f32.mxu0 0.0
        %790 = vmatmul.mubr.f32.gmra.mrb[0].mxu0 %v723
        %v791 = vpop.f32.mrb[0].mxu0
        %v792 = vadd.f32 0.0, %v791
        %v793 = vpop.f32.mrb[0].mxu0
        %794 = vdwg.mxu0
        %v796 = vrot.slane %v792, 4
        %v798 = vadd.f32 %v276, %v796
        %v799 = vmul.f32 %v798, 0.5
        %v800 = vtanh.pop %v799
        %v801 = vmul.f32 %v800, 0.5
        %v802 = vadd.f32 %v801, 0.5
        %v803 = vtanh.pop %v798
        %v805 = vrot.slane %v706, 7
        %v807 = vmul.f32 %v802, %v805
        %809 = vrot.lane.b32.xlu0 %v803, 68
        %v810 = vpop.permute.xlu0 %809
        %v812 = vmul.f32 %v802, %v810
        %814 = vrot.lane.b32.xlu0 %v812, 20
        %v815 = vpop.permute.xlu0 %814
        %v817 = vadd.f32 %v807, %v815
        %v818 = vtanh.pop %v817
        %820 = vrot.lane.b32.xlu0 %v818, 20
        %v821 = vpop.permute.xlu0 %820
        %v823 = vmul.f32 %v802, %v821
        %825 = vrot.lane.b32.xlu0 %v823, 88
        %v826 = vpop.permute.xlu0 %825
        %vm828 = vcmask 159748
        %829 = vst.msk [vmem:[#allocation2] sm:$0x10] %vm828, %v826
        %830 = vst.msk [vmem:[#allocation3 - $0x1] sm:$0x10] %vm828, %v826
        %v831 = vrot.slane %v823, 4
        %832 = vrot.lane.b32.xlu0 %v831, 88
        %v833 = vpop.permute.xlu0 %832
        %v834 = vsel %vm279, %v833, 0
        %836 = vmatprep.subr.mxu0 0.0
        %837 = vmatpush1.msra.mxu0 %v165
        %838 = vmatprep.subr.mxu0 0.0
        %839 = vmatpush1.msra.mxu0 %v166
        %840 = vmatprep.subr.mxu0 0.0
        %841 = vmatpush1.msra.mxu0 %v284
        %842 = vmatprep.subr.mxu0 0.0
        %843 = vmatpush1.msra.mxu0 0.0
        %844 = vmatprep.subr.mxu0 0.0
        %845 = vmatpush1.msra.mxu0 0.0
        %846 = vmatprep.subr.mxu0 0.0
        %847 = vmatpush1.msra.mxu0 0.0
        %848 = vmatprep.subr.mxu0 0.0
        %849 = vmatpush1.msra.mxu0 0.0
        %850 = vmatprep.subr.mxu0 0.0
        %851 = vmatpush1.msra.mxu0 0.0
        %852 = vmatprep.subr.mxu0 0.0
        %853 = vmatpush1.msra.mxu0 0.0
        %854 = vmatprep.subr.mxu0 0.0
        %855 = vmatpush1.msra.mxu0 0.0
        %856 = vmatprep.subr.mxu0 0.0
        %857 = vmatpush1.msra.mxu0 0.0
        %858 = vmatprep.subr.mxu0 0.0
        %859 = vmatpush1.msra.mxu0 0.0
        %860 = vmatprep.subr.mxu0 0.0
        %861 = vmatpush1.msra.mxu0 0.0
        %862 = vmatprep.subr.mxu0 0.0
        %863 = vmatpush1.msra.mxu0 0.0
        %864 = vmatprep.subr.mxu0 0.0
        %865 = vmatpush1.msra.mxu0 0.0
        %866 = vmatprep.subr.mxu0 0.0
        %867 = vmatpush1.msra.mxu0 0.0
        %868 = vmatprep.subr.mxu0 0.0
        %869 = vmatpush1.msra.mxu0 0.0
        %870 = vmatprep.subr.mxu0 0.0
        %871 = vmatpush1.msra.mxu0 0.0
        %872 = vmatprep.subr.mxu0 0.0
        %873 = vmatpush1.msra.mxu0 0.0
        %874 = vmatprep.subr.mxu0 0.0
        %875 = vmatpush1.msra.mxu0 0.0
        %876 = vmatprep.subr.mxu0 0.0
        %877 = vmatpush1.msra.mxu0 0.0
        %878 = vmatprep.subr.mxu0 0.0
        %879 = vmatpush1.msra.mxu0 0.0
        %880 = vmatprep.subr.mxu0 0.0
        %881 = vmatpush1.msra.mxu0 0.0
        %882 = vmatprep.subr.mxu0 0.0
        %883 = vmatpush1.msra.mxu0 0.0
        %884 = vmatprep.subr.mxu0 0.0
        %885 = vmatpush1.msra.mxu0 0.0
        %886 = vmatprep.subr.mxu0 0.0
        %887 = vmatpush1.msra.mxu0 0.0
        %888 = vmatprep.subr.mxu0 0.0
        %889 = vmatpush1.msra.mxu0 0.0
        %890 = vmatprep.subr.mxu0 0.0
        %891 = vmatpush1.msra.mxu0 0.0
        %892 = vmatprep.subr.mxu0 0.0
        %893 = vmatpush1.msra.mxu0 0.0
        %894 = vmatprep.subr.mxu0 0.0
        %895 = vmatpush1.msra.mxu0 0.0
        %896 = vmatprep.subr.mxu0 0.0
        %897 = vmatpush1.msra.mxu0 0.0
        %898 = vmatprep.subr.mxu0 0.0
        %899 = vmatpush1.msra.mxu0 0.0
        %900 = vmatprep.mubr.f32.mxu0 0.0
        %901 = vmatmul.mubr.f32.gmra.mrb[0].mxu0 %v834
        %v902 = vpop.f32.mrb[0].mxu0
        %v903 = vadd.f32 0.0, %v902
        %v904 = vpop.f32.mrb[0].mxu0
        %905 = vdwg.mxu0
        %v907 = vrot.slane %v903, 3
        %v909 = vadd.f32 %v276, %v907
        %v910 = vmul.f32 %v909, 0.5
        %v911 = vtanh.pop %v910
        %v912 = vmul.f32 %v911, 0.5
        %v913 = vadd.f32 %v912, 0.5
        %v914 = vtanh.pop %v909
        %v916 = vrot.slane %v817, 7
        %v918 = vmul.f32 %v913, %v916
        %920 = vrot.lane.b32.xlu0 %v914, 68
        %v921 = vpop.permute.xlu0 %920
        %v923 = vmul.f32 %v913, %v921
        %925 = vrot.lane.b32.xlu0 %v923, 20
        %v926 = vpop.permute.xlu0 %925
        %v928 = vadd.f32 %v918, %v926
        %v929 = vtanh.pop %v928
        %931 = vrot.lane.b32.xlu0 %v929, 20
        %v932 = vpop.permute.xlu0 %931
        %v934 = vmul.f32 %v913, %v932
        %936 = vrot.lane.b32.xlu0 %v934, 88
        %v937 = vpop.permute.xlu0 %936
        %vm939 = vcmask 160773
        %940 = vst.msk [vmem:[#allocation2] sm:$0x20] %vm939, %v937
        %941 = vst.msk [vmem:[#allocation3 - $0x3] sm:$0x20] %vm939, %v937
        %v942 = vrot.slane %v934, 5
        %943 = vrot.lane.b32.xlu0 %v942, 88
        %v944 = vpop.permute.xlu0 %943
        %v945 = vsel %vm279, %v944, 0
        %947 = vmatprep.subr.mxu0 0.0
        %948 = vmatpush1.msra.mxu0 %v165
        %949 = vmatprep.subr.mxu0 0.0
        %950 = vmatpush1.msra.mxu0 %v166
        %951 = vmatprep.subr.mxu0 0.0
        %952 = vmatpush1.msra.mxu0 %v284
        %953 = vmatprep.subr.mxu0 0.0
        %954 = vmatpush1.msra.mxu0 0.0
        %955 = vmatprep.subr.mxu0 0.0
        %956 = vmatpush1.msra.mxu0 0.0
        %957 = vmatprep.subr.mxu0 0.0
        %958 = vmatpush1.msra.mxu0 0.0
        %959 = vmatprep.subr.mxu0 0.0
        %960 = vmatpush1.msra.mxu0 0.0
        %961 = vmatprep.subr.mxu0 0.0
        %962 = vmatpush1.msra.mxu0 0.0
        %963 = vmatprep.subr.mxu0 0.0
        %964 = vmatpush1.msra.mxu0 0.0
        %965 = vmatprep.subr.mxu0 0.0
        %966 = vmatpush1.msra.mxu0 0.0
        %967 = vmatprep.subr.mxu0 0.0
        %968 = vmatpush1.msra.mxu0 0.0
        %969 = vmatprep.subr.mxu0 0.0
        %970 = vmatpush1.msra.mxu0 0.0
        %971 = vmatprep.subr.mxu0 0.0
        %972 = vmatpush1.msra.mxu0 0.0
        %973 = vmatprep.subr.mxu0 0.0
        %974 = vmatpush1.msra.mxu0 0.0
        %975 = vmatprep.subr.mxu0 0.0
        %976 = vmatpush1.msra.mxu0 0.0
        %977 = vmatprep.subr.mxu0 0.0
        %978 = vmatpush1.msra.mxu0 0.0
        %979 = vmatprep.subr.mxu0 0.0
        %980 = vmatpush1.msra.mxu0 0.0
        %981 = vmatprep.subr.mxu0 0.0
        %982 = vmatpush1.msra.mxu0 0.0
        %983 = vmatprep.subr.mxu0 0.0
        %984 = vmatpush1.msra.mxu0 0.0
        %985 = vmatprep.subr.mxu0 0.0
        %986 = vmatpush1.msra.mxu0 0.0
        %987 = vmatprep.subr.mxu0 0.0
        %988 = vmatpush1.msra.mxu0 0.0
        %989 = vmatprep.subr.mxu0 0.0
        %990 = vmatpush1.msra.mxu0 0.0
        %991 = vmatprep.subr.mxu0 0.0
        %992 = vmatpush1.msra.mxu0 0.0
        %993 = vmatprep.subr.mxu0 0.0
        %994 = vmatpush1.msra.mxu0 0.0
        %995 = vmatprep.subr.mxu0 0.0
        %996 = vmatpush1.msra.mxu0 0.0
        %997 = vmatprep.subr.mxu0 0.0
        %998 = vmatpush1.msra.mxu0 0.0
        %999 = vmatprep.subr.mxu0 0.0
        %1000 = vmatpush1.msra.mxu0 0.0
        %1001 = vmatprep.subr.mxu0 0.0
        %1002 = vmatpush1.msra.mxu0 0.0
        %1003 = vmatprep.subr.mxu0 0.0
        %1004 = vmatpush1.msra.mxu0 0.0
        %1005 = vmatprep.subr.mxu0 0.0
        %1006 = vmatpush1.msra.mxu0 0.0
        %1007 = vmatprep.subr.mxu0 0.0
        %1008 = vmatpush1.msra.mxu0 0.0
        %1009 = vmatprep.subr.mxu0 0.0
        %1010 = vmatpush1.msra.mxu0 0.0
        %1011 = vmatprep.mubr.f32.mxu0 0.0
        %1012 = vmatmul.mubr.f32.gmra.mrb[0].mxu0 %v945
        %v1013 = vpop.f32.mrb[0].mxu0
        %v1014 = vadd.f32 0.0, %v1013
        %v1015 = vpop.f32.mrb[0].mxu0
        %1016 = vdwg.mxu0
        %v1018 = vrot.slane %v1014, 2
        %v1020 = vadd.f32 %v276, %v1018
        %v1021 = vmul.f32 %v1020, 0.5
        %v1022 = vtanh.pop %v1021
        %v1023 = vmul.f32 %v1022, 0.5
        %v1024 = vadd.f32 %v1023, 0.5
        %v1025 = vtanh.pop %v1020
        %v1027 = vrot.slane %v928, 7
        %v1029 = vmul.f32 %v1024, %v1027
        %1031 = vrot.lane.b32.xlu0 %v1025, 68
        %v1032 = vpop.permute.xlu0 %1031
        %v1034 = vmul.f32 %v1024, %v1032
        %1036 = vrot.lane.b32.xlu0 %v1034, 20
        %v1037 = vpop.permute.xlu0 %1036
        %v1039 = vadd.f32 %v1029, %v1037
        %v1040 = vtanh.pop %v1039
        %1042 = vrot.lane.b32.xlu0 %v1040, 20
        %v1043 = vpop.permute.xlu0 %1042
        %v1045 = vmul.f32 %v1024, %v1043
        %1047 = vrot.lane.b32.xlu0 %v1045, 88
        %v1048 = vpop.permute.xlu0 %1047
        %vm1050 = vcmask 161798
        %1051 = vst.msk [vmem:[#allocation2] sm:$0x40] %vm1050, %v1048
        %1052 = vst.msk [vmem:[#allocation3 - $0x5] sm:$0x40] %vm1050, %v1048
        %v1053 = vrot.slane %v1045, 6
        %1054 = vrot.lane.b32.xlu0 %v1053, 88
        %v1055 = vpop.permute.xlu0 %1054
        %v1056 = vsel %vm279, %v1055, 0
        %1058 = vmatprep.subr.mxu0 0.0
        %1059 = vmatpush1.msra.mxu0 %v165
        %1060 = vmatprep.subr.mxu0 0.0
        %1061 = vmatpush1.msra.mxu0 %v166
        %1062 = vmatprep.subr.mxu0 0.0
        %1063 = vmatpush1.msra.mxu0 %v284
        %1064 = vmatprep.subr.mxu0 0.0
        %1065 = vmatpush1.msra.mxu0 0.0
        %1066 = vmatprep.subr.mxu0 0.0
        %1067 = vmatpush1.msra.mxu0 0.0
        %1068 = vmatprep.subr.mxu0 0.0
        %1069 = vmatpush1.msra.mxu0 0.0
        %1070 = vmatprep.subr.mxu0 0.0
        %1071 = vmatpush1.msra.mxu0 0.0
        %1072 = vmatprep.subr.mxu0 0.0
        %1073 = vmatpush1.msra.mxu0 0.0
        %1074 = vmatprep.subr.mxu0 0.0
        %1075 = vmatpush1.msra.mxu0 0.0
        %1076 = vmatprep.subr.mxu0 0.0
        %1077 = vmatpush1.msra.mxu0 0.0
        %1078 = vmatprep.subr.mxu0 0.0
        %1079 = vmatpush1.msra.mxu0 0.0
        %1080 = vmatprep.subr.mxu0 0.0
        %1081 = vmatpush1.msra.mxu0 0.0
        %1082 = vmatprep.subr.mxu0 0.0
        %1083 = vmatpush1.msra.mxu0 0.0
        %1084 = vmatprep.subr.mxu0 0.0
        %1085 = vmatpush1.msra.mxu0 0.0
        %1086 = vmatprep.subr.mxu0 0.0
        %1087 = vmatpush1.msra.mxu0 0.0
        %1088 = vmatprep.subr.mxu0 0.0
        %1089 = vmatpush1.msra.mxu0 0.0
        %1090 = vmatprep.subr.mxu0 0.0
        %1091 = vmatpush1.msra.mxu0 0.0
        %1092 = vmatprep.subr.mxu0 0.0
        %1093 = vmatpush1.msra.mxu0 0.0
        %1094 = vmatprep.subr.mxu0 0.0
        %1095 = vmatpush1.msra.mxu0 0.0
        %1096 = vmatprep.subr.mxu0 0.0
        %1097 = vmatpush1.msra.mxu0 0.0
        %1098 = vmatprep.subr.mxu0 0.0
        %1099 = vmatpush1.msra.mxu0 0.0
        %1100 = vmatprep.subr.mxu0 0.0
        %1101 = vmatpush1.msra.mxu0 0.0
        %1102 = vmatprep.subr.mxu0 0.0
        %1103 = vmatpush1.msra.mxu0 0.0
        %1104 = vmatprep.subr.mxu0 0.0
        %1105 = vmatpush1.msra.mxu0 0.0
        %1106 = vmatprep.subr.mxu0 0.0
        %1107 = vmatpush1.msra.mxu0 0.0
        %1108 = vmatprep.subr.mxu0 0.0
        %1109 = vmatpush1.msra.mxu0 0.0
        %1110 = vmatprep.subr.mxu0 0.0
        %1111 = vmatpush1.msra.mxu0 0.0
        %1112 = vmatprep.subr.mxu0 0.0
        %1113 = vmatpush1.msra.mxu0 0.0
        %1114 = vmatprep.subr.mxu0 0.0
        %1115 = vmatpush1.msra.mxu0 0.0
        %1116 = vmatprep.subr.mxu0 0.0
        %1117 = vmatpush1.msra.mxu0 0.0
        %1118 = vmatprep.subr.mxu0 0.0
        %1119 = vmatpush1.msra.mxu0 0.0
        %1120 = vmatprep.subr.mxu0 0.0
        %1121 = vmatpush1.msra.mxu0 0.0
        %1122 = vmatprep.mubr.f32.mxu0 0.0
        %1123 = vmatmul.mubr.f32.gmra.mrb[0].mxu0 %v1056
        %v1124 = vpop.f32.mrb[0].mxu0
        %v1125 = vadd.f32 0.0, %v1124
        %v1126 = vpop.f32.mrb[0].mxu0
        %1127 = vdwg.mxu0
        %v1129 = vrot.slane %v1125, 1
        %v1131 = vadd.f32 %v276, %v1129
        %v1132 = vmul.f32 %v1131, 0.5
        %v1133 = vtanh.pop %v1132
        %v1134 = vmul.f32 %v1133, 0.5
        %v1135 = vadd.f32 %v1134, 0.5
        %v1136 = vtanh.pop %v1131
        %v1138 = vrot.slane %v1039, 7
        %v1140 = vmul.f32 %v1135, %v1138
        %1142 = vrot.lane.b32.xlu0 %v1136, 68
        %v1143 = vpop.permute.xlu0 %1142
        %v1145 = vmul.f32 %v1135, %v1143
        %1147 = vrot.lane.b32.xlu0 %v1145, 20
        %v1148 = vpop.permute.xlu0 %1147
        %v1150 = vadd.f32 %v1140, %v1148
        %v1151 = vtanh.pop %v1150
        %1153 = vrot.lane.b32.xlu0 %v1151, 20
        %v1154 = vpop.permute.xlu0 %1153
        %v1156 = vmul.f32 %v1135, %v1154
        %1158 = vrot.lane.b32.xlu0 %v1156, 88
        %v1159 = vpop.permute.xlu0 %1158
        %vm1161 = vcmask 162823
        %1162 = vst.msk [vmem:[#allocation2] sm:$0x80] %vm1161, %v1159
        %1163 = vst.msk [vmem:[#allocation3 - $0x7] sm:$0x80] %vm1161, %v1159
        %v1164 = vld [vmem:[#allocation2] sm:$0xff]
        %v1165 = vld [vmem:[#allocation3] sm:$0xff]
        %v1167 = vsel %vm279, %v1165, 0
        %v1170 = vsel %vm205, %v175, 0
        %1172 = vmatprep.subr.mxu0 0.0
        %1173 = vmatpush1.msra.mxu0 %v173
        %1174 = vmatprep.subr.mxu0 0.0
        %1175 = vmatpush1.msra.mxu0 %v174
        %1176 = vmatprep.subr.mxu0 0.0
        %1177 = vmatpush1.msra.mxu0 %v1170
        %1178 = vmatprep.subr.mxu0 0.0
        %1179 = vmatpush1.msra.mxu0 0.0
        %1180 = vmatprep.subr.mxu0 0.0
        %1181 = vmatpush1.msra.mxu0 0.0
        %1182 = vmatprep.subr.mxu0 0.0
        %1183 = vmatpush1.msra.mxu0 0.0
        %1184 = vmatprep.subr.mxu0 0.0
        %1185 = vmatpush1.msra.mxu0 0.0
        %1186 = vmatprep.subr.mxu0 0.0
        %1187 = vmatpush1.msra.mxu0 0.0
        %1188 = vmatprep.subr.mxu0 0.0
        %1189 = vmatpush1.msra.mxu0 0.0
        %1190 = vmatprep.subr.mxu0 0.0
        %1191 = vmatpush1.msra.mxu0 0.0
        %1192 = vmatprep.subr.mxu0 0.0
        %1193 = vmatpush1.msra.mxu0 0.0
        %1194 = vmatprep.subr.mxu0 0.0
        %1195 = vmatpush1.msra.mxu0 0.0
        %1196 = vmatprep.subr.mxu0 0.0
        %1197 = vmatpush1.msra.mxu0 0.0
        %1198 = vmatprep.subr.mxu0 0.0
        %1199 = vmatpush1.msra.mxu0 0.0
        %1200 = vmatprep.subr.mxu0 0.0
        %1201 = vmatpush1.msra.mxu0 0.0
        %1202 = vmatprep.subr.mxu0 0.0
        %1203 = vmatpush1.msra.mxu0 0.0
        %1204 = vmatprep.subr.mxu0 0.0
        %1205 = vmatpush1.msra.mxu0 0.0
        %1206 = vmatprep.subr.mxu0 0.0
        %1207 = vmatpush1.msra.mxu0 0.0
        %1208 = vmatprep.subr.mxu0 0.0
        %1209 = vmatpush1.msra.mxu0 0.0
        %1210 = vmatprep.subr.mxu0 0.0
        %1211 = vmatpush1.msra.mxu0 0.0
        %1212 = vmatprep.subr.mxu0 0.0
        %1213 = vmatpush1.msra.mxu0 0.0
        %1214 = vmatprep.subr.mxu0 0.0
        %1215 = vmatpush1.msra.mxu0 0.0
        %1216 = vmatprep.subr.mxu0 0.0
        %1217 = vmatpush1.msra.mxu0 0.0
        %1218 = vmatprep.subr.mxu0 0.0
        %1219 = vmatpush1.msra.mxu0 0.0
        %1220 = vmatprep.subr.mxu0 0.0
        %1221 = vmatpush1.msra.mxu0 0.0
        %1222 = vmatprep.subr.mxu0 0.0
        %1223 = vmatpush1.msra.mxu0 0.0
        %1224 = vmatprep.subr.mxu0 0.0
        %1225 = vmatpush1.msra.mxu0 0.0
        %1226 = vmatprep.subr.mxu0 0.0
        %1227 = vmatpush1.msra.mxu0 0.0
        %1228 = vmatprep.subr.mxu0 0.0
        %1229 = vmatpush1.msra.mxu0 0.0
        %1230 = vmatprep.subr.mxu0 0.0
        %1231 = vmatpush1.msra.mxu0 0.0
        %1232 = vmatprep.subr.mxu0 0.0
        %1233 = vmatpush1.msra.mxu0 0.0
        %1234 = vmatprep.subr.mxu0 0.0
        %1235 = vmatpush1.msra.mxu0 0.0
        %1236 = vmatprep.mubr.f32.mxu0 0.0
        %1237 = vmatmul.mubr.f32.gmra.mrb[0].mxu0 %v1167
        %v1238 = vpop.f32.mrb[0].mxu0
        %v1239 = vadd.f32 0.0, %v1238
        %v1240 = vpop.f32.mrb[0].mxu0
        %1241 = vdwg.mxu0
        %v1243 = vsel %vm279, %v1164, 0
        %v1246 = vsel %vm205, %v172, 0
        %1248 = vmatprep.subr.mxu0 0.0
        %1249 = vmatpush1.msra.mxu0 %v170
        %1250 = vmatprep.subr.mxu0 0.0
        %1251 = vmatpush1.msra.mxu0 %v171
        %1252 = vmatprep.subr.mxu0 0.0
        %1253 = vmatpush1.msra.mxu0 %v1246
        %1254 = vmatprep.subr.mxu0 0.0
        %1255 = vmatpush1.msra.mxu0 0.0
        %1256 = vmatprep.subr.mxu0 0.0
        %1257 = vmatpush1.msra.mxu0 0.0
        %1258 = vmatprep.subr.mxu0 0.0
        %1259 = vmatpush1.msra.mxu0 0.0
        %1260 = vmatprep.subr.mxu0 0.0
        %1261 = vmatpush1.msra.mxu0 0.0
        %1262 = vmatprep.subr.mxu0 0.0
        %1263 = vmatpush1.msra.mxu0 0.0
        %1264 = vmatprep.subr.mxu0 0.0
        %1265 = vmatpush1.msra.mxu0 0.0
        %1266 = vmatprep.subr.mxu0 0.0
        %1267 = vmatpush1.msra.mxu0 0.0
        %1268 = vmatprep.subr.mxu0 0.0
        %1269 = vmatpush1.msra.mxu0 0.0
        %1270 = vmatprep.subr.mxu0 0.0
        %1271 = vmatpush1.msra.mxu0 0.0
        %1272 = vmatprep.subr.mxu0 0.0
        %1273 = vmatpush1.msra.mxu0 0.0
        %1274 = vmatprep.subr.mxu0 0.0
        %1275 = vmatpush1.msra.mxu0 0.0
        %1276 = vmatprep.subr.mxu0 0.0
        %1277 = vmatpush1.msra.mxu0 0.0
        %1278 = vmatprep.subr.mxu0 0.0
        %1279 = vmatpush1.msra.mxu0 0.0
        %1280 = vmatprep.subr.mxu0 0.0
        %1281 = vmatpush1.msra.mxu0 0.0
        %1282 = vmatprep.subr.mxu0 0.0
        %1283 = vmatpush1.msra.mxu0 0.0
        %1284 = vmatprep.subr.mxu0 0.0
        %1285 = vmatpush1.msra.mxu0 0.0
        %1286 = vmatprep.subr.mxu0 0.0
        %1287 = vmatpush1.msra.mxu0 0.0
        %1288 = vmatprep.subr.mxu0 0.0
        %1289 = vmatpush1.msra.mxu0 0.0
        %1290 = vmatprep.subr.mxu0 0.0
        %1291 = vmatpush1.msra.mxu0 0.0
        %1292 = vmatprep.subr.mxu0 0.0
        %1293 = vmatpush1.msra.mxu0 0.0
        %1294 = vmatprep.subr.mxu0 0.0
        %1295 = vmatpush1.msra.mxu0 0.0
        %1296 = vmatprep.subr.mxu0 0.0
        %1297 = vmatpush1.msra.mxu0 0.0
        %1298 = vmatprep.subr.mxu0 0.0
        %1299 = vmatpush1.msra.mxu0 0.0
        %1300 = vmatprep.subr.mxu0 0.0
        %1301 = vmatpush1.msra.mxu0 0.0
        %1302 = vmatprep.subr.mxu0 0.0
        %1303 = vmatpush1.msra.mxu0 0.0
        %1304 = vmatprep.subr.mxu0 0.0
        %1305 = vmatpush1.msra.mxu0 0.0
        %1306 = vmatprep.subr.mxu0 0.0
        %1307 = vmatpush1.msra.mxu0 0.0
        %1308 = vmatprep.subr.mxu0 0.0
        %1309 = vmatpush1.msra.mxu0 0.0
        %1310 = vmatprep.subr.mxu0 0.0
        %1311 = vmatpush1.msra.mxu0 0.0
        %1312 = vmatprep.mubr.f32.mxu0 0.0
        %1313 = vmatmul.mubr.f32.gmra.mrb[0].mxu0 %v1243
        %v1314 = vpop.f32.mrb[0].mxu0
        %v1315 = vadd.f32 %v1239, %v1314
        %v1316 = vpop.f32.mrb[0].mxu0
        %1317 = vdwg.mxu0
        %v1318 = vlaneseq
        %v1319 = vshrl.u32 %v1318, 7
        %v1320 = vsub.s32 0, %v1319
        %v1321 = vrot.slane %v176, %v1320
        %v1322 = vadd.f32 %v1315, %v1321
        %v1323 = vlaneseq
        %v1324 = vshrl.u32 %v1323, 7
        %v1325 = vadd.s32 %v1324, 8
        %v1326 = vadd.s32 %v1324, 16
        %vm1327 = vcmp.eq.s32.totalorder %v1324, %v188
        %vm1328 = vcmp.eq.s32.totalorder %v1325, %v188
        %vm1329 = vcmp.eq.s32.totalorder %v1326, %v188
        %v1330 = vsel %vm1327, 1, 0
        %v1331 = vsel %vm1328, 1, 0
        %v1332 = vsel %vm1329, 1, 0
        %v1333 = vcvt.s32.f32 %v1330
        %v1334 = vcvt.s32.f32 %v1331
        %v1335 = vcvt.s32.f32 %v1332
        %v1336 = vlaneseq
        %v1337 = vshrl.u32 %v1336, 7
        %v1338 = vsub.s32 1, %v1337
        %v1339 = vrot.slane %v1322, %v1338
        %v1340 = vmul.f32 %v1333, %v1339
        %v1341 = vmul.f32 %v1334, %v1339
        %v1342 = vmul.f32 %v1335, %v1339
        %vm1343 = vcmask 138240
        %v1344 = vsel %vm1343, %v1340, 0.0
        %1345 = vadd.xlane.f32.xlu0 %v1344
        %v1346 = vpop.xlane.xlu0 %1345
        %v1347 = vsel %vm1343, %v1341, 0.0
        %1348 = vadd.xlane.f32.xlu0 %v1347
        %v1349 = vpop.xlane.xlu0 %1348
        %vm1350 = vcmask 131072
        %v1351 = vsel %vm1350, %v1342, 0.0
        %1352 = vadd.xlane.f32.xlu0 %v1351
        %v1353 = vpop.xlane.xlu0 %1352
        %v1354 = vlaneseq
        %v1355 = vshrl.u32 %v1354, 7
        %v1356 = vsub.s32 3, %v1355
        %v1357 = vrot.slane %v1322, %v1356
        %v1358 = vmul.f32 %v1333, %v1357
        %v1359 = vmul.f32 %v1334, %v1357
        %v1360 = vmul.f32 %v1335, %v1357
        %v1361 = vsel %vm1343, %v1358, 0.0
        %1362 = vadd.xlane.f32.xlu0 %v1361
        %v1363 = vpop.xlane.xlu0 %1362
        %v1364 = vsel %vm1343, %v1359, 0.0
        %1365 = vadd.xlane.f32.xlu0 %v1364
        %v1366 = vpop.xlane.xlu0 %1365
        %v1367 = vsel %vm1350, %v1360, 0.0
        %1368 = vadd.xlane.f32.xlu0 %v1367
        %v1369 = vpop.xlane.xlu0 %1368
        %v1370 = vlaneseq
        %v1371 = vshrl.u32 %v1370, 7
        %v1372 = vsub.s32 5, %v1371
        %v1373 = vrot.slane %v1322, %v1372
        %v1374 = vmul.f32 %v1333, %v1373
        %v1375 = vmul.f32 %v1334, %v1373
        %v1376 = vmul.f32 %v1335, %v1373
        %v1377 = vsel %vm1343, %v1374, 0.0
        %1378 = vadd.xlane.f32.xlu0 %v1377
        %v1379 = vpop.xlane.xlu0 %1378
        %v1380 = vsel %vm1343, %v1375, 0.0
        %1381 = vadd.xlane.f32.xlu0 %v1380
        %v1382 = vpop.xlane.xlu0 %1381
        %v1383 = vsel %vm1350, %v1376, 0.0
        %1384 = vadd.xlane.f32.xlu0 %v1383
        %v1385 = vpop.xlane.xlu0 %1384
        %v1386 = vlaneseq
        %v1387 = vshrl.u32 %v1386, 7
        %v1388 = vsub.s32 7, %v1387
        %v1389 = vrot.slane %v1322, %v1388
        %v1390 = vmul.f32 %v1333, %v1389
        %v1391 = vmul.f32 %v1334, %v1389
        %v1392 = vmul.f32 %v1335, %v1389
        %v1393 = vsel %vm1343, %v1390, 0.0
        %1394 = vadd.xlane.f32.xlu0 %v1393
        %v1395 = vpop.xlane.xlu0 %1394
        %v1396 = vsel %vm1343, %v1391, 0.0
        %1397 = vadd.xlane.f32.xlu0 %v1396
        %v1398 = vpop.xlane.xlu0 %1397
        %v1399 = vsel %vm1350, %v1392, 0.0
        %1400 = vadd.xlane.f32.xlu0 %v1399
        %v1401 = vpop.xlane.xlu0 %1400
        %vm1402 = vcmp.eq.s32.totalorder %v1324, 15
        %vm1403 = vcmp.eq.s32.totalorder %v1325, 15
        %vm1404 = vcmp.eq.s32.totalorder %v1326, 15
        %v1405 = vsel %vm1402, 0.0, -10000.0
        %v1406 = vsel %vm1403, 0.0, -10000.0
        %v1407 = vsel %vm1404, 0.0, -10000.0
        %v1408 = vadd.f32 %v177, %v1405
        %v1409 = vadd.f32 %v178, %v1406
        %v1410 = vadd.f32 %v179, %v1407
        %v1411 = vsel %vm1343, %v1408, -inf
        %v1412 = vsel %vm1343, %v1409, -inf
        %v1413 = vsel %vm1350, %v1410, -inf
        %v1414 = vmax.f32 %v1411, %v1412
        %v1415 = vmax.f32 %v1414, %v1413
        %v1416 = vrot.slane %v1415, 4
        %v1417 = vmax.f32 %v1415, %v1416
        %v1418 = vrot.slane %v1417, 2
        %v1419 = vmax.f32 %v1417, %v1418
        %v1420 = vrot.slane %v1419, 1
        %v1421 = vmax.f32 %v1419, %v1420
        %vm1422 = vcmp.eq.f32.partialorder %v1408, %v1421
        %vm1423 = vcmp.eq.f32.partialorder %v1409, %v1421
        %vm1424 = vcmp.eq.f32.partialorder %v1410, %v1421
        %v1425 = vsel %vm1422, %v1324, 17
        %v1426 = vsel %vm1423, %v1325, 17
        %v1427 = vsel %vm1424, %v1326, 17
        %v1428 = vsel %vm1343, %v1425, 2147483647
        %v1429 = vsel %vm1343, %v1426, 2147483647
        %v1430 = vsel %vm1350, %v1427, 2147483647
        %vm1431 = vcmp.lt.s32.totalorder %v1428, %v1429
        %v1432 = vsel %vm1431, %v1428, %v1429
        %vm1433 = vcmp.lt.s32.totalorder %v1432, %v1430
        %v1434 = vsel %vm1433, %v1432, %v1430
        %v1435 = vrot.slane %v1434, 4
        %vm1436 = vcmp.lt.s32.totalorder %v1434, %v1435
        %v1437 = vsel %vm1436, %v1434, %v1435
        %v1438 = vrot.slane %v1437, 2
        %vm1439 = vcmp.lt.s32.totalorder %v1437, %v1438
        %v1440 = vsel %vm1439, %v1437, %v1438
        %v1441 = vrot.slane %v1440, 1
        %vm1442 = vcmp.lt.s32.totalorder %v1440, %v1441
        %v1443 = vsel %vm1442, %v1440, %v1441
        %v1444 = vadd.f32 %v1421, %v1322
        %v1445 = vlaneseq
        %v1446 = vshrl.u32 %v1445, 7
        %v1447 = vsub.s32 0, %v1446
        %v1448 = vrot.slane %v1444, %v1447
        %v1449 = vadd.f32 %v180, %v1448
        %v1450 = vadd.f32 %v181, %v1448
        %v1451 = vadd.f32 %v182, %v1448
        %v1452 = vsel %vm1343, %v1449, -inf
        %1453 = vmax.xlane.f32.xlu0 %v1452
        %v1454 = vpop.xlane.xlu0 %1453
        %v1455 = vsel %vm1343, %v1450, -inf
        %1456 = vmax.xlane.f32.xlu0 %v1455
        %v1457 = vpop.xlane.xlu0 %1456
        %v1458 = vsel %vm1350, %v1451, -inf
        %1459 = vmax.xlane.f32.xlu0 %v1458
        %v1460 = vpop.xlane.xlu0 %1459
        %vm1461 = vcmp.eq.f32.partialorder %v1449, %v1454
        %vm1462 = vcmp.eq.f32.partialorder %v1450, %v1457
        %vm1463 = vcmp.eq.f32.partialorder %v1451, %v1460
        %v1464 = vsel %vm1461, %v188, 17
        %v1465 = vsel %vm1462, %v188, 17
        %v1466 = vsel %vm1463, %v188, 17
        %v1467 = vsel %vm1343, %v1464, 2147483647
        %v1468 = vand.u32 %v1467, 65535
        %v1469 = vshra.s32 %v1467, 16
        %v1470 = vcvt.s32.f32 %v1468
        %v1471 = vcvt.s32.f32 %v1469
        %1472 = vmin.xlane.f32.xlu0 %v1471
        %v1473 = vpop.xlane.xlu0 %1472
        %vm1474 = vcmp.eq.f32.partialorder %v1471, %v1473
        %v1475 = vsel %vm1474, %v1470, inf
        %1476 = vmin.xlane.f32.xlu0 %v1475
        %v1477 = vpop.xlane.xlu0 %1476
        %v1478 = vcvt.f32.s32 %v1477
        %v1479 = vcvt.f32.s32 %v1473
        %v1480 = vshll.u32 %v1479, 16
        %v1481 = vadd.s32 %v1480, %v1478
        %v1482 = vsel %vm1343, %v1465, 2147483647
        %v1483 = vand.u32 %v1482, 65535
        %v1484 = vshra.s32 %v1482, 16
        %v1485 = vcvt.s32.f32 %v1483
        %v1486 = vcvt.s32.f32 %v1484
        %1487 = vmin.xlane.f32.xlu0 %v1486
        %v1488 = vpop.xlane.xlu0 %1487
        %vm1489 = vcmp.eq.f32.partialorder %v1486, %v1488
        %v1490 = vsel %vm1489, %v1485, inf
        %1491 = vmin.xlane.f32.xlu0 %v1490
        %v1492 = vpop.xlane.xlu0 %1491
        %v1493 = vcvt.f32.s32 %v1492
        %v1494 = vcvt.f32.s32 %v1488
        %v1495 = vshll.u32 %v1494, 16
        %v1496 = vadd.s32 %v1495, %v1493
        %v1497 = vsel %vm1350, %v1466, 2147483647
        %v1498 = vand.u32 %v1497, 65535
        %v1499 = vshra.s32 %v1497, 16
        %v1500 = vcvt.s32.f32 %v1498
        %v1501 = vcvt.s32.f32 %v1499
        %1502 = vmin.xlane.f32.xlu0 %v1501
        %v1503 = vpop.xlane.xlu0 %1502
        %vm1504 = vcmp.eq.f32.partialorder %v1501, %v1503
        %v1505 = vsel %vm1504, %v1500, inf
        %1506 = vmin.xlane.f32.xlu0 %v1505
        %v1507 = vpop.xlane.xlu0 %1506
        %v1508 = vcvt.f32.s32 %v1507
        %v1509 = vcvt.f32.s32 %v1503
        %v1510 = vshll.u32 %v1509, 16
        %v1511 = vadd.s32 %v1510, %v1508
        %v1512 = vadd.f32 %v1454, %v1346
        %v1513 = vadd.f32 %v1457, %v1349
        %v1514 = vadd.f32 %v1460, %v1353
        %v1515 = vadd.f32 %v177, %v1512
        %v1516 = vadd.f32 %v178, %v1513
        %v1517 = vadd.f32 %v179, %v1514
        %v1518 = vsel %vm1343, %v1515, -inf
        %v1519 = vsel %vm1343, %v1516, -inf
        %v1520 = vsel %vm1350, %v1517, -inf
        %v1521 = vmax.f32 %v1518, %v1519
        %v1522 = vmax.f32 %v1521, %v1520
        %v1523 = vrot.slane %v1522, 4
        %v1524 = vmax.f32 %v1522, %v1523
        %v1525 = vrot.slane %v1524, 2
        %v1526 = vmax.f32 %v1524, %v1525
        %v1527 = vrot.slane %v1526, 1
        %v1528 = vmax.f32 %v1526, %v1527
        %vm1529 = vcmp.eq.f32.partialorder %v1515, %v1528
        %vm1530 = vcmp.eq.f32.partialorder %v1516, %v1528
        %vm1531 = vcmp.eq.f32.partialorder %v1517, %v1528
        %v1532 = vsel %vm1529, %v1324, 17
        %v1533 = vsel %vm1530, %v1325, 17
        %v1534 = vsel %vm1531, %v1326, 17
        %v1535 = vsel %vm1343, %v1532, 2147483647
        %v1536 = vsel %vm1343, %v1533, 2147483647
        %v1537 = vsel %vm1350, %v1534, 2147483647
        %vm1538 = vcmp.lt.s32.totalorder %v1535, %v1536
        %v1539 = vsel %vm1538, %v1535, %v1536
        %vm1540 = vcmp.lt.s32.totalorder %v1539, %v1537
        %v1541 = vsel %vm1540, %v1539, %v1537
        %v1542 = vrot.slane %v1541, 4
        %vm1543 = vcmp.lt.s32.totalorder %v1541, %v1542
        %v1544 = vsel %vm1543, %v1541, %v1542
        %v1545 = vrot.slane %v1544, 2
        %vm1546 = vcmp.lt.s32.totalorder %v1544, %v1545
        %v1547 = vsel %vm1546, %v1544, %v1545
        %v1548 = vrot.slane %v1547, 1
        %vm1549 = vcmp.lt.s32.totalorder %v1547, %v1548
        %v1550 = vsel %vm1549, %v1547, %v1548
        %v1551 = vadd.f32 %v1528, %v1322
        %v1552 = vlaneseq
        %v1553 = vshrl.u32 %v1552, 7
        %v1554 = vsub.s32 2, %v1553
        %v1555 = vrot.slane %v1551, %v1554
        %v1556 = vadd.f32 %v180, %v1555
        %v1557 = vadd.f32 %v181, %v1555
        %v1558 = vadd.f32 %v182, %v1555
        %v1559 = vsel %vm1343, %v1556, -inf
        %1560 = vmax.xlane.f32.xlu0 %v1559
        %v1561 = vpop.xlane.xlu0 %1560
        %v1562 = vsel %vm1343, %v1557, -inf
        %1563 = vmax.xlane.f32.xlu0 %v1562
        %v1564 = vpop.xlane.xlu0 %1563
        %v1565 = vsel %vm1350, %v1558, -inf
        %1566 = vmax.xlane.f32.xlu0 %v1565
        %v1567 = vpop.xlane.xlu0 %1566
        %vm1568 = vcmp.eq.f32.partialorder %v1556, %v1561
        %vm1569 = vcmp.eq.f32.partialorder %v1557, %v1564
        %vm1570 = vcmp.eq.f32.partialorder %v1558, %v1567
        %v1571 = vsel %vm1568, %v188, 17
        %v1572 = vsel %vm1569, %v188, 17
        %v1573 = vsel %vm1570, %v188, 17
        %v1574 = vsel %vm1343, %v1571, 2147483647
        %v1575 = vand.u32 %v1574, 65535
        %v1576 = vshra.s32 %v1574, 16
        %v1577 = vcvt.s32.f32 %v1575
        %v1578 = vcvt.s32.f32 %v1576
        %1579 = vmin.xlane.f32.xlu0 %v1578
        %v1580 = vpop.xlane.xlu0 %1579
        %vm1581 = vcmp.eq.f32.partialorder %v1578, %v1580
        %v1582 = vsel %vm1581, %v1577, inf
        %1583 = vmin.xlane.f32.xlu0 %v1582
        %v1584 = vpop.xlane.xlu0 %1583
        %v1585 = vcvt.f32.s32 %v1584
        %v1586 = vcvt.f32.s32 %v1580
        %v1587 = vshll.u32 %v1586, 16
        %v1588 = vadd.s32 %v1587, %v1585
        %v1589 = vsel %vm1343, %v1572, 2147483647
        %v1590 = vand.u32 %v1589, 65535
        %v1591 = vshra.s32 %v1589, 16
        %v1592 = vcvt.s32.f32 %v1590
        %v1593 = vcvt.s32.f32 %v1591
        %1594 = vmin.xlane.f32.xlu0 %v1593
        %v1595 = vpop.xlane.xlu0 %1594
        %vm1596 = vcmp.eq.f32.partialorder %v1593, %v1595
        %v1597 = vsel %vm1596, %v1592, inf
        %1598 = vmin.xlane.f32.xlu0 %v1597
        %v1599 = vpop.xlane.xlu0 %1598
        %v1600 = vcvt.f32.s32 %v1599
        %v1601 = vcvt.f32.s32 %v1595
        %v1602 = vshll.u32 %v1601, 16
        %v1603 = vadd.s32 %v1602, %v1600
        %v1604 = vsel %vm1350, %v1573, 2147483647
        %v1605 = vand.u32 %v1604, 65535
        %v1606 = vshra.s32 %v1604, 16
        %v1607 = vcvt.s32.f32 %v1605
        %v1608 = vcvt.s32.f32 %v1606
        %1609 = vmin.xlane.f32.xlu0 %v1608
        %v1610 = vpop.xlane.xlu0 %1609
        %vm1611 = vcmp.eq.f32.partialorder %v1608, %v1610
        %v1612 = vsel %vm1611, %v1607, inf
        %1613 = vmin.xlane.f32.xlu0 %v1612
        %v1614 = vpop.xlane.xlu0 %1613
        %v1615 = vcvt.f32.s32 %v1614
        %v1616 = vcvt.f32.s32 %v1610
        %v1617 = vshll.u32 %v1616, 16
        %v1618 = vadd.s32 %v1617, %v1615
        %v1619 = vadd.f32 %v1561, %v1363
        %v1620 = vadd.f32 %v1564, %v1366
        %v1621 = vadd.f32 %v1567, %v1369
        %v1622 = vadd.f32 %v177, %v1619
        %v1623 = vadd.f32 %v178, %v1620
        %v1624 = vadd.f32 %v179, %v1621
        %v1625 = vsel %vm1343, %v1622, -inf
        %v1626 = vsel %vm1343, %v1623, -inf
        %v1627 = vsel %vm1350, %v1624, -inf
        %v1628 = vmax.f32 %v1625, %v1626
        %v1629 = vmax.f32 %v1628, %v1627
        %v1630 = vrot.slane %v1629, 4
        %v1631 = vmax.f32 %v1629, %v1630
        %v1632 = vrot.slane %v1631, 2
        %v1633 = vmax.f32 %v1631, %v1632
        %v1634 = vrot.slane %v1633, 1
        %v1635 = vmax.f32 %v1633, %v1634
        %vm1636 = vcmp.eq.f32.partialorder %v1622, %v1635
        %vm1637 = vcmp.eq.f32.partialorder %v1623, %v1635
        %vm1638 = vcmp.eq.f32.partialorder %v1624, %v1635
        %v1639 = vsel %vm1636, %v1324, 17
        %v1640 = vsel %vm1637, %v1325, 17
        %v1641 = vsel %vm1638, %v1326, 17
        %v1642 = vsel %vm1343, %v1639, 2147483647
        %v1643 = vsel %vm1343, %v1640, 2147483647
        %v1644 = vsel %vm1350, %v1641, 2147483647
        %vm1645 = vcmp.lt.s32.totalorder %v1642, %v1643
        %v1646 = vsel %vm1645, %v1642, %v1643
        %vm1647 = vcmp.lt.s32.totalorder %v1646, %v1644
        %v1648 = vsel %vm1647, %v1646, %v1644
        %v1649 = vrot.slane %v1648, 4
        %vm1650 = vcmp.lt.s32.totalorder %v1648, %v1649
        %v1651 = vsel %vm1650, %v1648, %v1649
        %v1652 = vrot.slane %v1651, 2
        %vm1653 = vcmp.lt.s32.totalorder %v1651, %v1652
        %v1654 = vsel %vm1653, %v1651, %v1652
        %v1655 = vrot.slane %v1654, 1
        %vm1656 = vcmp.lt.s32.totalorder %v1654, %v1655
        %v1657 = vsel %vm1656, %v1654, %v1655
        %v1658 = vadd.f32 %v1635, %v1322
        %v1659 = vlaneseq
        %v1660 = vshrl.u32 %v1659, 7
        %v1661 = vsub.s32 4, %v1660
        %v1662 = vrot.slane %v1658, %v1661
        %v1663 = vadd.f32 %v180, %v1662
        %v1664 = vadd.f32 %v181, %v1662
        %v1665 = vadd.f32 %v182, %v1662
        %v1666 = vsel %vm1343, %v1663, -inf
        %1667 = vmax.xlane.f32.xlu0 %v1666
        %v1668 = vpop.xlane.xlu0 %1667
        %v1669 = vsel %vm1343, %v1664, -inf
        %1670 = vmax.xlane.f32.xlu0 %v1669
        %v1671 = vpop.xlane.xlu0 %1670
        %v1672 = vsel %vm1350, %v1665, -inf
        %1673 = vmax.xlane.f32.xlu0 %v1672
        %v1674 = vpop.xlane.xlu0 %1673
        %vm1675 = vcmp.eq.f32.partialorder %v1663, %v1668
        %vm1676 = vcmp.eq.f32.partialorder %v1664, %v1671
        %vm1677 = vcmp.eq.f32.partialorder %v1665, %v1674
        %v1678 = vsel %vm1675, %v188, 17
        %v1679 = vsel %vm1676, %v188, 17
        %v1680 = vsel %vm1677, %v188, 17
        %v1681 = vsel %vm1343, %v1678, 2147483647
        %v1682 = vand.u32 %v1681, 65535
        %v1683 = vshra.s32 %v1681, 16
        %v1684 = vcvt.s32.f32 %v1682
        %v1685 = vcvt.s32.f32 %v1683
        %1686 = vmin.xlane.f32.xlu0 %v1685
        %v1687 = vpop.xlane.xlu0 %1686
        %vm1688 = vcmp.eq.f32.partialorder %v1685, %v1687
        %v1689 = vsel %vm1688, %v1684, inf
        %1690 = vmin.xlane.f32.xlu0 %v1689
        %v1691 = vpop.xlane.xlu0 %1690
        %v1692 = vcvt.f32.s32 %v1691
        %v1693 = vcvt.f32.s32 %v1687
        %v1694 = vshll.u32 %v1693, 16
        %v1695 = vadd.s32 %v1694, %v1692
        %v1696 = vsel %vm1343, %v1679, 2147483647
        %v1697 = vand.u32 %v1696, 65535
        %v1698 = vshra.s32 %v1696, 16
        %v1699 = vcvt.s32.f32 %v1697
        %v1700 = vcvt.s32.f32 %v1698
        %1701 = vmin.xlane.f32.xlu0 %v1700
        %v1702 = vpop.xlane.xlu0 %1701
        %vm1703 = vcmp.eq.f32.partialorder %v1700, %v1702
        %v1704 = vsel %vm1703, %v1699, inf
        %1705 = vmin.xlane.f32.xlu0 %v1704
        %v1706 = vpop.xlane.xlu0 %1705
        %v1707 = vcvt.f32.s32 %v1706
        %v1708 = vcvt.f32.s32 %v1702
        %v1709 = vshll.u32 %v1708, 16
        %v1710 = vadd.s32 %v1709, %v1707
        %v1711 = vsel %vm1350, %v1680, 2147483647
        %v1712 = vand.u32 %v1711, 65535
        %v1713 = vshra.s32 %v1711, 16
        %v1714 = vcvt.s32.f32 %v1712
        %v1715 = vcvt.s32.f32 %v1713
        %1716 = vmin.xlane.f32.xlu0 %v1715
        %v1717 = vpop.xlane.xlu0 %1716
        %vm1718 = vcmp.eq.f32.partialorder %v1715, %v1717
        %v1719 = vsel %vm1718, %v1714, inf
        %1720 = vmin.xlane.f32.xlu0 %v1719
        %v1721 = vpop.xlane.xlu0 %1720
        %v1722 = vcvt.f32.s32 %v1721
        %v1723 = vcvt.f32.s32 %v1717
        %v1724 = vshll.u32 %v1723, 16
        %v1725 = vadd.s32 %v1724, %v1722
        %v1726 = vadd.f32 %v1668, %v1379
        %v1727 = vadd.f32 %v1671, %v1382
        %v1728 = vadd.f32 %v1674, %v1385
        %v1729 = vadd.f32 %v177, %v1726
        %v1730 = vadd.f32 %v178, %v1727
        %v1731 = vadd.f32 %v179, %v1728
        %v1732 = vsel %vm1343, %v1729, -inf
        %v1733 = vsel %vm1343, %v1730, -inf
        %v1734 = vsel %vm1350, %v1731, -inf
        %v1735 = vmax.f32 %v1732, %v1733
        %v1736 = vmax.f32 %v1735, %v1734
        %v1737 = vrot.slane %v1736, 4
        %v1738 = vmax.f32 %v1736, %v1737
        %v1739 = vrot.slane %v1738, 2
        %v1740 = vmax.f32 %v1738, %v1739
        %v1741 = vrot.slane %v1740, 1
        %v1742 = vmax.f32 %v1740, %v1741
        %vm1743 = vcmp.eq.f32.partialorder %v1729, %v1742
        %vm1744 = vcmp.eq.f32.partialorder %v1730, %v1742
        %vm1745 = vcmp.eq.f32.partialorder %v1731, %v1742
        %v1746 = vsel %vm1743, %v1324, 17
        %v1747 = vsel %vm1744, %v1325, 17
        %v1748 = vsel %vm1745, %v1326, 17
        %v1749 = vsel %vm1343, %v1746, 2147483647
        %v1750 = vsel %vm1343, %v1747, 2147483647
        %v1751 = vsel %vm1350, %v1748, 2147483647
        %vm1752 = vcmp.lt.s32.totalorder %v1749, %v1750
        %v1753 = vsel %vm1752, %v1749, %v1750
        %vm1754 = vcmp.lt.s32.totalorder %v1753, %v1751
        %v1755 = vsel %vm1754, %v1753, %v1751
        %v1756 = vrot.slane %v1755, 4
        %vm1757 = vcmp.lt.s32.totalorder %v1755, %v1756
        %v1758 = vsel %vm1757, %v1755, %v1756
        %v1759 = vrot.slane %v1758, 2
        %vm1760 = vcmp.lt.s32.totalorder %v1758, %v1759
        %v1761 = vsel %vm1760, %v1758, %v1759
        %v1762 = vrot.slane %v1761, 1
        %vm1763 = vcmp.lt.s32.totalorder %v1761, %v1762
        %v1764 = vsel %vm1763, %v1761, %v1762
        %v1765 = vadd.f32 %v1742, %v1322
        %v1766 = vlaneseq
        %v1767 = vshrl.u32 %v1766, 7
        %v1768 = vsub.s32 6, %v1767
        %v1769 = vrot.slane %v1765, %v1768
        %v1770 = vadd.f32 %v180, %v1769
        %v1771 = vadd.f32 %v181, %v1769
        %v1772 = vadd.f32 %v182, %v1769
        %v1773 = vsel %vm1343, %v1770, -inf
        %1774 = vmax.xlane.f32.xlu0 %v1773
        %v1775 = vpop.xlane.xlu0 %1774
        %v1776 = vsel %vm1343, %v1771, -inf
        %1777 = vmax.xlane.f32.xlu0 %v1776
        %v1778 = vpop.xlane.xlu0 %1777
        %v1779 = vsel %vm1350, %v1772, -inf
        %1780 = vmax.xlane.f32.xlu0 %v1779
        %v1781 = vpop.xlane.xlu0 %1780
        %vm1782 = vcmp.eq.f32.partialorder %v1770, %v1775
        %vm1783 = vcmp.eq.f32.partialorder %v1771, %v1778
        %vm1784 = vcmp.eq.f32.partialorder %v1772, %v1781
        %v1785 = vsel %vm1782, %v188, 17
        %v1786 = vsel %vm1783, %v188, 17
        %v1787 = vsel %vm1784, %v188, 17
        %v1788 = vsel %vm1343, %v1785, 2147483647
        %v1789 = vand.u32 %v1788, 65535
        %v1790 = vshra.s32 %v1788, 16
        %v1791 = vcvt.s32.f32 %v1789
        %v1792 = vcvt.s32.f32 %v1790
        %1793 = vmin.xlane.f32.xlu0 %v1792
        %v1794 = vpop.xlane.xlu0 %1793
        %vm1795 = vcmp.eq.f32.partialorder %v1792, %v1794
        %v1796 = vsel %vm1795, %v1791, inf
        %1797 = vmin.xlane.f32.xlu0 %v1796
        %v1798 = vpop.xlane.xlu0 %1797
        %v1799 = vcvt.f32.s32 %v1798
        %v1800 = vcvt.f32.s32 %v1794
        %v1801 = vshll.u32 %v1800, 16
        %v1802 = vadd.s32 %v1801, %v1799
        %v1803 = vsel %vm1343, %v1786, 2147483647
        %v1804 = vand.u32 %v1803, 65535
        %v1805 = vshra.s32 %v1803, 16
        %v1806 = vcvt.s32.f32 %v1804
        %v1807 = vcvt.s32.f32 %v1805
        %1808 = vmin.xlane.f32.xlu0 %v1807
        %v1809 = vpop.xlane.xlu0 %1808
        %vm1810 = vcmp.eq.f32.partialorder %v1807, %v1809
        %v1811 = vsel %vm1810, %v1806, inf
        %1812 = vmin.xlane.f32.xlu0 %v1811
        %v1813 = vpop.xlane.xlu0 %1812
        %v1814 = vcvt.f32.s32 %v1813
        %v1815 = vcvt.f32.s32 %v1809
        %v1816 = vshll.u32 %v1815, 16
        %v1817 = vadd.s32 %v1816, %v1814
        %v1818 = vsel %vm1350, %v1787, 2147483647
        %v1819 = vand.u32 %v1818, 65535
        %v1820 = vshra.s32 %v1818, 16
        %v1821 = vcvt.s32.f32 %v1819
        %v1822 = vcvt.s32.f32 %v1820
        %1823 = vmin.xlane.f32.xlu0 %v1822
        %v1824 = vpop.xlane.xlu0 %1823
        %vm1825 = vcmp.eq.f32.partialorder %v1822, %v1824
        %v1826 = vsel %vm1825, %v1821, inf
        %1827 = vmin.xlane.f32.xlu0 %v1826
        %v1828 = vpop.xlane.xlu0 %1827
        %v1829 = vcvt.f32.s32 %v1828
        %v1830 = vcvt.f32.s32 %v1824
        %v1831 = vshll.u32 %v1830, 16
        %v1832 = vadd.s32 %v1831, %v1829
        %v1833 = vadd.f32 %v1775, %v1395
        %v1834 = vadd.f32 %v1778, %v1398
        %v1835 = vadd.f32 %v1781, %v1401
        %v1836 = vadd.f32 %v1833, %v183
        %v1837 = vadd.f32 %v1834, %v184
        %v1838 = vadd.f32 %v1835, %v185
        %vm1839 = vcmask 7168
        %v1840 = vsel %vm1839, %v1836, -inf
        %v1841 = vsel %vm1839, %v1837, -inf
        %vm1842 = vcmask 0
        %v1843 = vsel %vm1842, %v1838, -inf
        %v1844 = vmax.f32 %v1840, %v1841
        %v1845 = vmax.f32 %v1844, %v1843
        %v1846 = vrot.slane %v1845, 4
        %v1847 = vmax.f32 %v1845, %v1846
        %v1848 = vrot.slane %v1847, 2
        %v1849 = vmax.f32 %v1847, %v1848
        %v1850 = vrot.slane %v1849, 1
        %v1851 = vmax.f32 %v1849, %v1850
        %vm1852 = vcmp.eq.f32.partialorder %v1836, %v1851
        %vm1853 = vcmp.eq.f32.partialorder %v1837, %v1851
        %vm1854 = vcmp.eq.f32.partialorder %v1838, %v1851
        %v1855 = vsel %vm1852, %v1324, 17
        %v1856 = vsel %vm1853, %v1325, 17
        %v1857 = vsel %vm1854, %v1326, 17
        %v1858 = vsel %vm1839, %v1855, 2147483647
        %v1859 = vsel %vm1839, %v1856, 2147483647
        %v1860 = vsel %vm1842, %v1857, 2147483647
        %vm1861 = vcmp.lt.s32.totalorder %v1858, %v1859
        %v1862 = vsel %vm1861, %v1858, %v1859
        %vm1863 = vcmp.lt.s32.totalorder %v1862, %v1860
        %v1864 = vsel %vm1863, %v1862, %v1860
        %v1865 = vrot.slane %v1864, 4
        %vm1866 = vcmp.lt.s32.totalorder %v1864, %v1865
        %v1867 = vsel %vm1866, %v1864, %v1865
        %v1868 = vrot.slane %v1867, 2
        %vm1869 = vcmp.lt.s32.totalorder %v1867, %v1868
        %v1870 = vsel %vm1869, %v1867, %v1868
        %v1871 = vrot.slane %v1870, 1
        %vm1872 = vcmp.lt.s32.totalorder %v1870, %v1871
        %v1873 = vsel %vm1872, %v1870, %v1871
        %vm1874 = vcmp.eq.s32.totalorder %v188, 0
        %1876 = vset.pattern.permute.xlu0 0
        %1877 = vperm.xlu0 %1876, %v1851
        %v1878 = vpop.permute.xlu0 %1877
        %v1880 = vsel %vm1874, %v1878, 0.0
        %vm1882 = vcmp.eq.s32.totalorder %v188, 8
        %1883 = vset.pattern.permute.xlu0 0
        %1884 = vperm.xlu0 %1883, %v1873
        %v1885 = vpop.permute.xlu0 %1884
        %v1886 = vsel %vm1882, %v1885, %v1880
        %vm1887 = vcmp.eq.s32.totalorder %v1324, %v1873
        %vm1888 = vcmp.eq.s32.totalorder %v1325, %v1873
        %vm1889 = vcmp.eq.s32.totalorder %v1326, %v1873
        %v1890 = vsel %vm1887, %v1802, 0
        %v1891 = vsel %vm1888, %v1817, 0
        %v1892 = vsel %vm1889, %v1832, 0
        %v1893 = vsel %vm1839, %v1890, 0
        %v1894 = vsel %vm1839, %v1891, 0
        %v1895 = vsel %vm1842, %v1892, 0
        %v1896 = vadd.s32 %v1893, %v1894
        %v1897 = vadd.s32 %v1896, %v1895
        %v1898 = vrot.slane %v1897, 4
        %v1899 = vadd.s32 %v1897, %v1898
        %v1900 = vrot.slane %v1899, 2
        %v1901 = vadd.s32 %v1899, %v1900
        %v1902 = vrot.slane %v1901, 1
        %v1903 = vadd.s32 %v1901, %v1902
        %vm1904 = vcmp.eq.s32.totalorder %v188, 7
        %1905 = vset.pattern.permute.xlu0 0
        %1906 = vperm.xlu0 %1905, %v1903
        %v1907 = vpop.permute.xlu0 %1906
        %v1908 = vsel %vm1904, %v1907, %v1886
        %vm1909 = vcmp.eq.s32.totalorder %v188, %v1907
        %v1910 = vsel %vm1909, %v1764, 0
        %v1911 = vsel %vm1343, %v1910, 0
        %v1912 = vand.u32 %v1911, 65535
        %v1913 = vshrl.u32 %v1911, 16
        %v1914 = vcvt.s32.f32 %v1912
        %v1915 = vcvt.s32.f32 %v1913
        %1916 = vadd.xlane.f32.xlu0 %v1914
        %v1917 = vpop.xlane.xlu0 %1916
        %1918 = vadd.xlane.f32.xlu0 %v1915
        %v1919 = vpop.xlane.xlu0 %1918
        %v1920 = vcvt.f32.s32 %v1917
        %v1921 = vcvt.f32.s32 %v1919
        %v1922 = vshll.u32 %v1921, 16
        %v1923 = vadd.s32 %v1922, %v1920
        %vm1924 = vcmp.eq.s32.totalorder %v188, 6
        %v1925 = vsel %vm1924, %v1923, %v1908
        %vm1926 = vcmp.eq.s32.totalorder %v1324, %v1923
        %vm1927 = vcmp.eq.s32.totalorder %v1325, %v1923
        %vm1928 = vcmp.eq.s32.totalorder %v1326, %v1923
        %v1929 = vsel %vm1926, %v1695, 0
        %v1930 = vsel %vm1927, %v1710, 0
        %v1931 = vsel %vm1928, %v1725, 0
        %vm1932 = vcmask 1040384
        %v1933 = vsel %vm1932, %v1931, 0
        %v1934 = vadd.s32 %v1929, %v1930
        %v1935 = vadd.s32 %v1934, %v1933
        %v1936 = vrot.slane %v1935, 4
        %v1937 = vadd.s32 %v1935, %v1936
        %v1938 = vrot.slane %v1937, 2
        %v1939 = vadd.s32 %v1937, %v1938
        %v1940 = vrot.slane %v1939, 1
        %v1941 = vadd.s32 %v1939, %v1940
        %vm1942 = vcmp.eq.s32.totalorder %v188, 5
        %v1943 = vsel %vm1942, %v1941, %v1925
        %vm1944 = vcmp.eq.s32.totalorder %v188, %v1941
        %v1945 = vsel %vm1944, %v1657, 0
        %v1946 = vsel %vm1343, %v1945, 0
        %v1947 = vand.u32 %v1946, 65535
        %v1948 = vshrl.u32 %v1946, 16
        %v1949 = vcvt.s32.f32 %v1947
        %v1950 = vcvt.s32.f32 %v1948
        %1951 = vadd.xlane.f32.xlu0 %v1949
        %v1952 = vpop.xlane.xlu0 %1951
        %1953 = vadd.xlane.f32.xlu0 %v1950
        %v1954 = vpop.xlane.xlu0 %1953
        %v1955 = vcvt.f32.s32 %v1952
        %v1956 = vcvt.f32.s32 %v1954
        %v1957 = vshll.u32 %v1956, 16
        %v1958 = vadd.s32 %v1957, %v1955
        %vm1959 = vcmp.eq.s32.totalorder %v188, 4
        %v1960 = vsel %vm1959, %v1958, %v1943
        %vm1961 = vcmp.eq.s32.totalorder %v1324, %v1958
        %vm1962 = vcmp.eq.s32.totalorder %v1325, %v1958
        %vm1963 = vcmp.eq.s32.totalorder %v1326, %v1958
        %v1964 = vsel %vm1961, %v1588, 0
        %v1965 = vsel %vm1962, %v1603, 0
        %v1966 = vsel %vm1963, %v1618, 0
        %v1967 = vsel %vm1932, %v1966, 0
        %v1968 = vadd.s32 %v1964, %v1965
        %v1969 = vadd.s32 %v1968, %v1967
        %v1970 = vrot.slane %v1969, 4
        %v1971 = vadd.s32 %v1969, %v1970
        %v1972 = vrot.slane %v1971, 2
        %v1973 = vadd.s32 %v1971, %v1972
        %v1974 = vrot.slane %v1973, 1
        %v1975 = vadd.s32 %v1973, %v1974
        %vm1976 = vcmp.eq.s32.totalorder %v188, 3
        %v1977 = vsel %vm1976, %v1975, %v1960
        %vm1978 = vcmp.eq.s32.totalorder %v188, %v1975
        %v1979 = vsel %vm1978, %v1550, 0
        %v1980 = vsel %vm1343, %v1979, 0
        %v1981 = vand.u32 %v1980, 65535
        %v1982 = vshrl.u32 %v1980, 16
        %v1983 = vcvt.s32.f32 %v1981
        %v1984 = vcvt.s32.f32 %v1982
        %1985 = vadd.xlane.f32.xlu0 %v1983
        %v1986 = vpop.xlane.xlu0 %1985
        %1987 = vadd.xlane.f32.xlu0 %v1984
        %v1988 = vpop.xlane.xlu0 %1987
        %v1989 = vcvt.f32.s32 %v1986
        %v1990 = vcvt.f32.s32 %v1988
        %v1991 = vshll.u32 %v1990, 16
        %v1992 = vadd.s32 %v1991, %v1989
        %vm1993 = vcmp.eq.s32.totalorder %v188, 2
        %v1994 = vsel %vm1993, %v1992, %v1977
        %vm1995 = vcmp.eq.s32.totalorder %v1324, %v1992
        %vm1996 = vcmp.eq.s32.totalorder %v1325, %v1992
        %vm1997 = vcmp.eq.s32.totalorder %v1326, %v1992
        %v1998 = vsel %vm1995, %v1481, 0
        %v1999 = vsel %vm1996, %v1496, 0
        %v2000 = vsel %vm1997, %v1511, 0
        %v2001 = vsel %vm1932, %v2000, 0
        %v2002 = vadd.s32 %v1998, %v1999
        %v2003 = vadd.s32 %v2002, %v2001
        %v2004 = vrot.slane %v2003, 4
        %v2005 = vadd.s32 %v2003, %v2004
        %v2006 = vrot.slane %v2005, 2
        %v2007 = vadd.s32 %v2005, %v2006
        %v2008 = vrot.slane %v2007, 1
        %v2009 = vadd.s32 %v2007, %v2008
        %vm2010 = vcmp.eq.s32.totalorder %v188, 1
        %v2011 = vsel %vm2010, %v2009, %v1994
        %vm2012 = vcmp.eq.s32.totalorder %v188, %v2009
        %v2013 = vsel %vm2012, %v1443, 0
        %v2014 = vsel %vm1343, %v2013, 0
        %v2015 = vand.u32 %v2014, 65535
        %v2016 = vshrl.u32 %v2014, 16
        %v2017 = vcvt.s32.f32 %v2015
        %v2018 = vcvt.s32.f32 %v2016
        %2019 = vadd.xlane.f32.xlu0 %v2017
        %v2020 = vpop.xlane.xlu0 %2019
        %2021 = vadd.xlane.f32.xlu0 %v2018
        %v2022 = vpop.xlane.xlu0 %2021
        %v2023 = vcvt.f32.s32 %v2020
        %v2024 = vcvt.f32.s32 %v2022
        %v2025 = vshll.u32 %v2024, 16
        %v2026 = vadd.s32 %v2025, %v2023
        %vm2027 = vcmp.eq.s32.totalorder %v188, 9
        %v2028 = vsel %vm2027, %v2026, %v2011
        %2029 = vst [vmem:[%s151] sm:$0x1] %v2028
        %p2030 = scmp.lt.s32.totalorder %s14, 3
        %s2031 = scalar_select %p2030, %s14, 3
        %s2032 = scalar_lea.vmem %s2, %s2031
        // Predicated region
        $region33: #{_forward.1} parent=27 // pred_check
          %p2033 = pneg %p79
        $region34: #{_forward.1} parent=27 // pred_check_branch
          %2035 = sbr.rel (%p2033) target = $region36
        $region35: #{_forward.1} parent=27 // pred_region
          _
        $region36: #{_forward.1} parent=27 // pred_fallthru
          _
      $region28: #{_forward.1} parent=5 // pred_fallthru
        _
      %p2036 = scmp.le.s32.totalorder 2, %s9
      // Predicated region
      $region37: #{_forward.1} parent=5 // pred_check
        %p2037 = pneg %p2036
      $region38: #{_forward.1} parent=5 // pred_check_branch
        %2039 = sbr.rel (%p2037) target = $region40
      $region39: #{_forward.1} parent=5 // pred_region
        %s2040 = ssub.s32 %s9, 2
        // Predicated region
        $region41: #{_forward.1} parent=39 // pred_check
          %p2041 = pneg %p85
        $region42: #{_forward.1} parent=39 // pred_check_branch
          %2043 = sbr.rel (%p2041) target = $region44
        $region43: #{_forward.1} parent=39 // pred_region
          %p2044 = scmp.lt.s32.totalorder %s15, 3
          %s2045 = scalar_select %p2044, %s15, 3
          %s2046 = scalar_lea.vmem %s2, %s2045
        $region44: #{_forward.1} parent=39 // pred_fallthru
          _
      $region40: #{_forward.1} parent=5 // pred_fallthru
        _
    $region6: #{_forward.1} parent=1 // loop_footer
      %s13 = sadd.s32 1, %s9
    $region7: #{_forward.1} parent=1 // loop_footer_branch
      %8 = sbr.rel target = $region3
    $region8: #{_forward.1} parent=1 // loop_exit
      _
    %2047 = vsyncpa [#allocation5], 1
    %s2048 = scalar_lea.sflag [#allocation5], 1
    %2049 = vsyncpa %s2048, 1

</llo_original>
